<compile_context>
chip_gen: v6e
topology: v6e:2x2x1
jax: 0.10.0
libtpu: 0.0.40
codegen_flags: <defaults>
</compile_context>

<pallas_src>
import functools

import jax
import jax.numpy as jnp
from jax.experimental import pallas as pl
from jax.experimental.pallas import tpu as pltpu


def _round_up(n, m):
    return ((n + m - 1) // m) * m


def cbow_kernel(B, W, idx_ref, emb_hbm, w_ref, b_ref, out_ref,
                gather_buf, pooled_ref, sem):
    # idx_ref   : SMEM (B*W,)        int32 token ids, (w, b)-ordered (scalar prefetch)
    # emb_hbm   : HBM  (V, E_pad)    f32 embedding table (pl.ANY, no auto-DMA)
    # w_ref     : VMEM (E_pad, tv)   bf16 tile of the pre-transposed linear weight
    # b_ref     : VMEM (1, tv)       f32 bias tile
    # out_ref   : VMEM (B_pad, tv)   f32 logits tile
    # gather_buf: VMEM (B*W, E_pad)  f32 gathered embedding rows (scratch)
    # pooled_ref: VMEM (B_pad, E_pad) f32 pooled embeddings (scratch, persists across j)
    # sem       : DMA semaphores (B*W,)
    j = pl.program_id(0)
    n_rows = B * W

    @pl.when(j == 0)
    def _():
        # DMA-gather only the B*W rows we need, straight from HBM.
        copies = []
        for r in range(n_rows):
            copies.append(pltpu.make_async_copy(
                emb_hbm.at[pl.ds(idx_ref[r], 1)],
                gather_buf.at[pl.ds(r, 1)],
                sem.at[r]))
        for cp in copies:
            cp.start()
        for cp in copies:
            cp.wait()

        rows = gather_buf[...]                                        # (B*W, E_pad)
        # nn.Embedding(max_norm=1): rows with L2 norm > 1 scaled by 1/(norm + 1e-7).
        nrm = jnp.sqrt(jnp.sum(rows * rows, axis=-1, keepdims=True))  # (B*W, 1)
        scale = jnp.where(nrm > 1.0, pl.reciprocal(nrm + 1e-7, approx=True), 1.0)
        rows = rows * scale

        # AvgPool1d(W): rows are (w, b)-ordered (row index w*B + b), so the window
        # mean is a sum of W contiguous (B, E_pad) slabs (no per-row RMW, no gather).
        acc = rows[0:B, :]
        for w in range(1, W):
            acc = acc + rows[w * B:(w + 1) * B, :]
        pooled = acc * (1.0 / W)                                      # (B, E_pad)

        # Zero the padded batch rows once so the matmul below is deterministic.
        pooled_ref[...] = jnp.zeros_like(pooled_ref)
        pooled_ref[pl.ds(0, B), :] = pooled

    # One V-tile of the linear layer: bf16 operands on the MXU, f32 accumulation.
    logits = jnp.dot(pooled_ref[...].astype(w_ref.dtype), w_ref[...],
                     preferred_element_type=jnp.float32)              # (B_pad, tv)
    out_ref[...] = logits + b_ref[...]


def prepare_cbow_params(embed_w, linear_w, linear_b):
    """One-time layout / dtype prep. Call ONCE, not per forward step."""
    V, E = embed_w.shape
    E_pad = _round_up(E, 128)
    V_pad = _round_up(V, 128)
    # Embedding table: only E is padded (lane-dense rows); V stays unpadded — the
    # kernel gathers rows by index, it never streams the whole table.
    emb_p = jnp.zeros((V, E_pad), jnp.float32).at[:, :E].set(embed_w.astype(jnp.float32))
    # Linear weight: pre-transpose to (E_pad, V_pad) and cast to bf16 once.
    w_t = jnp.zeros((E_pad, V_pad), jnp.float32).at[:E, :V].set(
        linear_w.astype(jnp.float32).T).astype(jnp.bfloat16)
    b_p = jnp.zeros((1, V_pad), jnp.float32).at[0, :V].set(linear_b.astype(jnp.float32))
    return emb_p, w_t, b_p


def cbow_forward(x, emb_p, w_t, b_p, vocab_size, y=None, *, v_tile=512):
    B, W = x.shape
    V = vocab_size
    E_pad, V_pad = w_t.shape
    B_pad = _round_up(max(B, 8), 8)

    tv = min(v_tile, V_pad)
    while V_pad % tv:      # fall back to a smaller 128-multiple that divides V_pad
        tv -= 128

    # Token ids flattened in (w, b) order: idx_flat[w*B + b] = x[b, w]. Tiny array.
    idx_flat = jnp.transpose(x.astype(jnp.int32)).reshape(B * W)

    kernel = functools.partial(cbow_kernel, B, W)

    logits_pad = pl.pallas_call(
        kernel,
        out_shape=jax.ShapeDtypeStruct((B_pad, V_pad), jnp.float32),
        grid_spec=pltpu.PrefetchScalarGridSpec(
            num_scalar_prefetch=1,
            grid=(V_pad // tv,),
            in_specs=[
                pl.BlockSpec(memory_space=pl.ANY),                 # embedding table in HBM
                pl.BlockSpec((E_pad, tv), lambda j, idx: (0, j)),  # weight tile (bf16)
                pl.BlockSpec((1, tv), lambda j, idx: (0, j)),      # bias tile
            ],
            out_specs=pl.BlockSpec((B_pad, tv), lambda j, idx: (0, j)),
            scratch_shapes=[
                pltpu.VMEM((B * W, E_pad), jnp.float32),   # gathered rows
                pltpu.VMEM((B_pad, E_pad), jnp.float32),   # pooled embeddings
                pltpu.SemaphoreType.DMA((B * W,)),
            ],
        ),
        compiler_params=pltpu.CompilerParams(
            # Later V-tiles read the pooled scratch written at j == 0 -> sequential axis.
            dimension_semantics=("arbitrary",),
            vmem_limit_bytes=32 * 1024 * 1024,
        ),
    )(idx_flat, emb_p, w_t, b_p)

    logits = logits_pad[:B, :V]
    if y is None:
        return logits
    # CrossEntropyLoss (mean reduction) — thin plain-JAX glue on the kernel's logits.
    logp = jax.nn.log_softmax(logits, axis=-1)
    return -jnp.mean(jnp.take_along_axis(logp, y[:, None].astype(jnp.int32), axis=-1))


if __name__ == "__main__":
    vocab_size, embed_size, window_length, batch = 64, 32, 8, 2

    key = jax.random.PRNGKey(0)
    k1, k2, k3, k4, k5 = jax.random.split(key, 5)

    # Deterministic init matching CBOW.__init__ shapes:
    #   embed: N(0, 1) (nn.Embedding default); linear: U(-1/sqrt(E), 1/sqrt(E)).
    embed_w = jax.random.normal(k1, (vocab_size, embed_size), jnp.float32)
    bound = 1.0 / (embed_size ** 0.5)
    linear_w = jax.random.uniform(k2, (vocab_size, embed_size), jnp.float32, -bound, bound)
    linear_b = jax.random.uniform(k3, (vocab_size,), jnp.float32, -bound, bound)

    x = jax.random.randint(k4, (batch, window_length), 0, vocab_size, jnp.int32)
    y = jax.random.randint(k5, (batch,), 0, vocab_size, jnp.int32)

    emb_p, w_t, b_p = prepare_cbow_params(embed_w, linear_w, linear_b)  # one-time prep

    logits = jax.block_until_ready(cbow_forward(x, emb_p, w_t, b_p, vocab_size))
    loss = jax.block_until_ready(cbow_forward(x, emb_p, w_t, b_p, vocab_size, y))

    assert logits.shape == (batch, vocab_size)
    assert loss.shape == ()
    print("KERNEL_OK")
</pallas_src>

<mosaic_0001>
module attributes {stable_mosaic.version = 11 : i64} {
  func.func @cbow_kernel(%arg0: i32, %arg1: memref<16xi32, #tpu.memory_space<smem>>, %arg2: memref<64x128xf32, #tpu.memory_space<any>>, %arg3: memref<128x128xbf16, #tpu.memory_space<vmem>>, %arg4: memref<1x128xf32, #tpu.memory_space<vmem>>, %arg5: memref<8x128xf32, #tpu.memory_space<vmem>>, %arg6: memref<16x128xf32, #tpu.memory_space<vmem>>, %arg7: memref<8x128xf32, #tpu.memory_space<vmem>>, %arg8: memref<16x!tpu.dma_semaphore, #tpu.memory_space<semaphore_mem>>) attributes {dimension_semantics = [#tpu.dimension_semantics<arbitrary>], iteration_bounds = array<i64: 1>, scalar_prefetch = 1 : i64, scratch_operands = 3 : i64, tpu.core_type = #tpu.core_type<tc>, window_params = [{}, {transform_indices = @transform_1, window_bounds = array<i64: 128, 128>}, {transform_indices = @transform_2, window_bounds = array<i64: 1, 128>}, {transform_indices = @transform_3, window_bounds = array<i64: 8, 128>}]} {
    %c0_i32 = arith.constant 0 : i32
    %0 = arith.cmpi eq, %arg0, %c0_i32 : i32
    %1 = arith.extui %0 : i1 to i32
    %c0_i32_0 = arith.constant 0 : i32
    %2 = arith.cmpi ne, %1, %c0_i32_0 : i32
    scf.if %2 {
      %c0_8 = arith.constant 0 : index
      %11 = memref.load %arg1[%c0_8] : memref<16xi32, #tpu.memory_space<smem>>
      %c1 = arith.constant 1 : index
      %12 = memref.load %arg1[%c1] : memref<16xi32, #tpu.memory_space<smem>>
      %c2 = arith.constant 2 : index
      %13 = memref.load %arg1[%c2] : memref<16xi32, #tpu.memory_space<smem>>
      %c3 = arith.constant 3 : index
      %14 = memref.load %arg1[%c3] : memref<16xi32, #tpu.memory_space<smem>>
      %c4 = arith.constant 4 : index
      %15 = memref.load %arg1[%c4] : memref<16xi32, #tpu.memory_space<smem>>
      %c5 = arith.constant 5 : index
      %16 = memref.load %arg1[%c5] : memref<16xi32, #tpu.memory_space<smem>>
      %c6 = arith.constant 6 : index
      %17 = memref.load %arg1[%c6] : memref<16xi32, #tpu.memory_space<smem>>
      %c7 = arith.constant 7 : index
      %18 = memref.load %arg1[%c7] : memref<16xi32, #tpu.memory_space<smem>>
      %c8 = arith.constant 8 : index
      %19 = memref.load %arg1[%c8] : memref<16xi32, #tpu.memory_space<smem>>
      %c9 = arith.constant 9 : index
      %20 = memref.load %arg1[%c9] : memref<16xi32, #tpu.memory_space<smem>>
      %c10 = arith.constant 10 : index
      %21 = memref.load %arg1[%c10] : memref<16xi32, #tpu.memory_space<smem>>
      %c11 = arith.constant 11 : index
      %22 = memref.load %arg1[%c11] : memref<16xi32, #tpu.memory_space<smem>>
      %c12 = arith.constant 12 : index
      %23 = memref.load %arg1[%c12] : memref<16xi32, #tpu.memory_space<smem>>
      %c13 = arith.constant 13 : index
      %24 = memref.load %arg1[%c13] : memref<16xi32, #tpu.memory_space<smem>>
      %c14 = arith.constant 14 : index
      %25 = memref.load %arg1[%c14] : memref<16xi32, #tpu.memory_space<smem>>
      %c15 = arith.constant 15 : index
      %26 = memref.load %arg1[%c15] : memref<16xi32, #tpu.memory_space<smem>>
      %c0_i32_9 = arith.constant 0 : i32
      %c0_i32_10 = arith.constant 0 : i32
      %27 = tpu.memref_slice %arg2[%11, %c0_i32_10] : memref<64x128xf32, #tpu.memory_space<any>> -> memref<1x128xf32, #tpu.memory_space<any>>
      %c0_i32_11 = arith.constant 0 : i32
      %c0_i32_12 = arith.constant 0 : i32
      %28 = tpu.memref_slice %arg6[%c0_i32_11, %c0_i32_12] : memref<16x128xf32, #tpu.memory_space<vmem>> -> memref<1x128xf32, #tpu.memory_space<vmem>>
      %29 = tpu.memref_slice %arg8[%c0_i32_9] : memref<16x!tpu.dma_semaphore, #tpu.memory_space<semaphore_mem>> -> memref<1x!tpu.dma_semaphore, #tpu.memory_space<semaphore_mem>>
      %30 = tpu.memref_squeeze %29 : memref<1x!tpu.dma_semaphore, #tpu.memory_space<semaphore_mem>> -> memref<!tpu.dma_semaphore, #tpu.memory_space<semaphore_mem>>
      tpu.enqueue_dma source(%27 : memref<1x128xf32, #tpu.memory_space<any>>) target(%28 : memref<1x128xf32, #tpu.memory_space<vmem>>) target_semaphore(%30 : memref<!tpu.dma_semaphore, #tpu.memory_space<semaphore_mem>>)
      %c1_i32 = arith.constant 1 : i32
      %c0_i32_13 = arith.constant 0 : i32
      %31 = tpu.memref_slice %arg2[%12, %c0_i32_13] : memref<64x128xf32, #tpu.memory_space<any>> -> memref<1x128xf32, #tpu.memory_space<any>>
      %c1_i32_14 = arith.constant 1 : i32
      %c0_i32_15 = arith.constant 0 : i32
      %32 = tpu.memref_slice %arg6[%c1_i32_14, %c0_i32_15] : memref<16x128xf32, #tpu.memory_space<vmem>> -> memref<1x128xf32, #tpu.memory_space<vmem>>
      %33 = tpu.memref_slice %arg8[%c1_i32] : memref<16x!tpu.dma_semaphore, #tpu.memory_space<semaphore_mem>> -> memref<1x!tpu.dma_semaphore, #tpu.memory_space<semaphore_mem>>
      %34 = tpu.memref_squeeze %33 : memref<1x!tpu.dma_semaphore, #tpu.memory_space<semaphore_mem>> -> memref<!tpu.dma_semaphore, #tpu.memory_space<semaphore_mem>>
      tpu.enqueue_dma source(%31 : memref<1x128xf32, #tpu.memory_space<any>>) target(%32 : memref<1x128xf32, #tpu.memory_space<vmem>>) target_semaphore(%34 : memref<!tpu.dma_semaphore, #tpu.memory_space<semaphore_mem>>)
      %c2_i32 = arith.constant 2 : i32
      %c0_i32_16 = arith.constant 0 : i32
      %35 = tpu.memref_slice %arg2[%13, %c0_i32_16] : memref<64x128xf32, #tpu.memory_space<any>> -> memref<1x128xf32, #tpu.memory_space<any>>
      %c2_i32_17 = arith.constant 2 : i32
      %c0_i32_18 = arith.constant 0 : i32
      %36 = tpu.memref_slice %arg6[%c2_i32_17, %c0_i32_18] : memref<16x128xf32, #tpu.memory_space<vmem>> -> memref<1x128xf32, #tpu.memory_space<vmem>>
      %37 = tpu.memref_slice %arg8[%c2_i32] : memref<16x!tpu.dma_semaphore, #tpu.memory_space<semaphore_mem>> -> memref<1x!tpu.dma_semaphore, #tpu.memory_space<semaphore_mem>>
      %38 = tpu.memref_squeeze %37 : memref<1x!tpu.dma_semaphore, #tpu.memory_space<semaphore_mem>> -> memref<!tpu.dma_semaphore, #tpu.memory_space<semaphore_mem>>
      tpu.enqueue_dma source(%35 : memref<1x128xf32, #tpu.memory_space<any>>) target(%36 : memref<1x128xf32, #tpu.memory_space<vmem>>) target_semaphore(%38 : memref<!tpu.dma_semaphore, #tpu.memory_space<semaphore_mem>>)
      %c3_i32 = arith.constant 3 : i32
      %c0_i32_19 = arith.constant 0 : i32
      %39 = tpu.memref_slice %arg2[%14, %c0_i32_19] : memref<64x128xf32, #tpu.memory_space<any>> -> memref<1x128xf32, #tpu.memory_space<any>>
      %c3_i32_20 = arith.constant 3 : i32
      %c0_i32_21 = arith.constant 0 : i32
      %40 = tpu.memref_slice %arg6[%c3_i32_20, %c0_i32_21] : memref<16x128xf32, #tpu.memory_space<vmem>> -> memref<1x128xf32, #tpu.memory_space<vmem>>
      %41 = tpu.memref_slice %arg8[%c3_i32] : memref<16x!tpu.dma_semaphore, #tpu.memory_space<semaphore_mem>> -> memref<1x!tpu.dma_semaphore, #tpu.memory_space<semaphore_mem>>
      %42 = tpu.memref_squeeze %41 : memref<1x!tpu.dma_semaphore, #tpu.memory_space<semaphore_mem>> -> memref<!tpu.dma_semaphore, #tpu.memory_space<semaphore_mem>>
      tpu.enqueue_dma source(%39 : memref<1x128xf32, #tpu.memory_space<any>>) target(%40 : memref<1x128xf32, #tpu.memory_space<vmem>>) target_semaphore(%42 : memref<!tpu.dma_semaphore, #tpu.memory_space<semaphore_mem>>)
      %c4_i32 = arith.constant 4 : i32
      %c0_i32_22 = arith.constant 0 : i32
      %43 = tpu.memref_slice %arg2[%15, %c0_i32_22] : memref<64x128xf32, #tpu.memory_space<any>> -> memref<1x128xf32, #tpu.memory_space<any>>
      %c4_i32_23 = arith.constant 4 : i32
      %c0_i32_24 = arith.constant 0 : i32
      %44 = tpu.memref_slice %arg6[%c4_i32_23, %c0_i32_24] : memref<16x128xf32, #tpu.memory_space<vmem>> -> memref<1x128xf32, #tpu.memory_space<vmem>>
      %45 = tpu.memref_slice %arg8[%c4_i32] : memref<16x!tpu.dma_semaphore, #tpu.memory_space<semaphore_mem>> -> memref<1x!tpu.dma_semaphore, #tpu.memory_space<semaphore_mem>>
      %46 = tpu.memref_squeeze %45 : memref<1x!tpu.dma_semaphore, #tpu.memory_space<semaphore_mem>> -> memref<!tpu.dma_semaphore, #tpu.memory_space<semaphore_mem>>
      tpu.enqueue_dma source(%43 : memref<1x128xf32, #tpu.memory_space<any>>) target(%44 : memref<1x128xf32, #tpu.memory_space<vmem>>) target_semaphore(%46 : memref<!tpu.dma_semaphore, #tpu.memory_space<semaphore_mem>>)
      %c5_i32 = arith.constant 5 : i32
      %c0_i32_25 = arith.constant 0 : i32
      %47 = tpu.memref_slice %arg2[%16, %c0_i32_25] : memref<64x128xf32, #tpu.memory_space<any>> -> memref<1x128xf32, #tpu.memory_space<any>>
      %c5_i32_26 = arith.constant 5 : i32
      %c0_i32_27 = arith.constant 0 : i32
      %48 = tpu.memref_slice %arg6[%c5_i32_26, %c0_i32_27] : memref<16x128xf32, #tpu.memory_space<vmem>> -> memref<1x128xf32, #tpu.memory_space<vmem>>
      %49 = tpu.memref_slice %arg8[%c5_i32] : memref<16x!tpu.dma_semaphore, #tpu.memory_space<semaphore_mem>> -> memref<1x!tpu.dma_semaphore, #tpu.memory_space<semaphore_mem>>
      %50 = tpu.memref_squeeze %49 : memref<1x!tpu.dma_semaphore, #tpu.memory_space<semaphore_mem>> -> memref<!tpu.dma_semaphore, #tpu.memory_space<semaphore_mem>>
      tpu.enqueue_dma source(%47 : memref<1x128xf32, #tpu.memory_space<any>>) target(%48 : memref<1x128xf32, #tpu.memory_space<vmem>>) target_semaphore(%50 : memref<!tpu.dma_semaphore, #tpu.memory_space<semaphore_mem>>)
      %c6_i32 = arith.constant 6 : i32
      %c0_i32_28 = arith.constant 0 : i32
      %51 = tpu.memref_slice %arg2[%17, %c0_i32_28] : memref<64x128xf32, #tpu.memory_space<any>> -> memref<1x128xf32, #tpu.memory_space<any>>
      %c6_i32_29 = arith.constant 6 : i32
      %c0_i32_30 = arith.constant 0 : i32
      %52 = tpu.memref_slice %arg6[%c6_i32_29, %c0_i32_30] : memref<16x128xf32, #tpu.memory_space<vmem>> -> memref<1x128xf32, #tpu.memory_space<vmem>>
      %53 = tpu.memref_slice %arg8[%c6_i32] : memref<16x!tpu.dma_semaphore, #tpu.memory_space<semaphore_mem>> -> memref<1x!tpu.dma_semaphore, #tpu.memory_space<semaphore_mem>>
      %54 = tpu.memref_squeeze %53 : memref<1x!tpu.dma_semaphore, #tpu.memory_space<semaphore_mem>> -> memref<!tpu.dma_semaphore, #tpu.memory_space<semaphore_mem>>
      tpu.enqueue_dma source(%51 : memref<1x128xf32, #tpu.memory_space<any>>) target(%52 : memref<1x128xf32, #tpu.memory_space<vmem>>) target_semaphore(%54 : memref<!tpu.dma_semaphore, #tpu.memory_space<semaphore_mem>>)
      %c7_i32 = arith.constant 7 : i32
      %c0_i32_31 = arith.constant 0 : i32
      %55 = tpu.memref_slice %arg2[%18, %c0_i32_31] : memref<64x128xf32, #tpu.memory_space<any>> -> memref<1x128xf32, #tpu.memory_space<any>>
      %c7_i32_32 = arith.constant 7 : i32
      %c0_i32_33 = arith.constant 0 : i32
      %56 = tpu.memref_slice %arg6[%c7_i32_32, %c0_i32_33] : memref<16x128xf32, #tpu.memory_space<vmem>> -> memref<1x128xf32, #tpu.memory_space<vmem>>
      %57 = tpu.memref_slice %arg8[%c7_i32] : memref<16x!tpu.dma_semaphore, #tpu.memory_space<semaphore_mem>> -> memref<1x!tpu.dma_semaphore, #tpu.memory_space<semaphore_mem>>
      %58 = tpu.memref_squeeze %57 : memref<1x!tpu.dma_semaphore, #tpu.memory_space<semaphore_mem>> -> memref<!tpu.dma_semaphore, #tpu.memory_space<semaphore_mem>>
      tpu.enqueue_dma source(%55 : memref<1x128xf32, #tpu.memory_space<any>>) target(%56 : memref<1x128xf32, #tpu.memory_space<vmem>>) target_semaphore(%58 : memref<!tpu.dma_semaphore, #tpu.memory_space<semaphore_mem>>)
      %c8_i32 = arith.constant 8 : i32
      %c0_i32_34 = arith.constant 0 : i32
      %59 = tpu.memref_slice %arg2[%19, %c0_i32_34] : memref<64x128xf32, #tpu.memory_space<any>> -> memref<1x128xf32, #tpu.memory_space<any>>
      %c8_i32_35 = arith.constant 8 : i32
      %c0_i32_36 = arith.constant 0 : i32
      %60 = tpu.memref_slice %arg6[%c8_i32_35, %c0_i32_36] : memref<16x128xf32, #tpu.memory_space<vmem>> -> memref<1x128xf32, #tpu.memory_space<vmem>>
      %61 = tpu.memref_slice %arg8[%c8_i32] : memref<16x!tpu.dma_semaphore, #tpu.memory_space<semaphore_mem>> -> memref<1x!tpu.dma_semaphore, #tpu.memory_space<semaphore_mem>>
      %62 = tpu.memref_squeeze %61 : memref<1x!tpu.dma_semaphore, #tpu.memory_space<semaphore_mem>> -> memref<!tpu.dma_semaphore, #tpu.memory_space<semaphore_mem>>
      tpu.enqueue_dma source(%59 : memref<1x128xf32, #tpu.memory_space<any>>) target(%60 : memref<1x128xf32, #tpu.memory_space<vmem>>) target_semaphore(%62 : memref<!tpu.dma_semaphore, #tpu.memory_space<semaphore_mem>>)
      %c9_i32 = arith.constant 9 : i32
      %c0_i32_37 = arith.constant 0 : i32
      %63 = tpu.memref_slice %arg2[%20, %c0_i32_37] : memref<64x128xf32, #tpu.memory_space<any>> -> memref<1x128xf32, #tpu.memory_space<any>>
      %c9_i32_38 = arith.constant 9 : i32
      %c0_i32_39 = arith.constant 0 : i32
      %64 = tpu.memref_slice %arg6[%c9_i32_38, %c0_i32_39] : memref<16x128xf32, #tpu.memory_space<vmem>> -> memref<1x128xf32, #tpu.memory_space<vmem>>
      %65 = tpu.memref_slice %arg8[%c9_i32] : memref<16x!tpu.dma_semaphore, #tpu.memory_space<semaphore_mem>> -> memref<1x!tpu.dma_semaphore, #tpu.memory_space<semaphore_mem>>
      %66 = tpu.memref_squeeze %65 : memref<1x!tpu.dma_semaphore, #tpu.memory_space<semaphore_mem>> -> memref<!tpu.dma_semaphore, #tpu.memory_space<semaphore_mem>>
      tpu.enqueue_dma source(%63 : memref<1x128xf32, #tpu.memory_space<any>>) target(%64 : memref<1x128xf32, #tpu.memory_space<vmem>>) target_semaphore(%66 : memref<!tpu.dma_semaphore, #tpu.memory_space<semaphore_mem>>)
      %c10_i32 = arith.constant 10 : i32
      %c0_i32_40 = arith.constant 0 : i32
      %67 = tpu.memref_slice %arg2[%21, %c0_i32_40] : memref<64x128xf32, #tpu.memory_space<any>> -> memref<1x128xf32, #tpu.memory_space<any>>
      %c10_i32_41 = arith.constant 10 : i32
      %c0_i32_42 = arith.constant 0 : i32
      %68 = tpu.memref_slice %arg6[%c10_i32_41, %c0_i32_42] : memref<16x128xf32, #tpu.memory_space<vmem>> -> memref<1x128xf32, #tpu.memory_space<vmem>>
      %69 = tpu.memref_slice %arg8[%c10_i32] : memref<16x!tpu.dma_semaphore, #tpu.memory_space<semaphore_mem>> -> memref<1x!tpu.dma_semaphore, #tpu.memory_space<semaphore_mem>>
      %70 = tpu.memref_squeeze %69 : memref<1x!tpu.dma_semaphore, #tpu.memory_space<semaphore_mem>> -> memref<!tpu.dma_semaphore, #tpu.memory_space<semaphore_mem>>
      tpu.enqueue_dma source(%67 : memref<1x128xf32, #tpu.memory_space<any>>) target(%68 : memref<1x128xf32, #tpu.memory_space<vmem>>) target_semaphore(%70 : memref<!tpu.dma_semaphore, #tpu.memory_space<semaphore_mem>>)
      %c11_i32 = arith.constant 11 : i32
      %c0_i32_43 = arith.constant 0 : i32
      %71 = tpu.memref_slice %arg2[%22, %c0_i32_43] : memref<64x128xf32, #tpu.memory_space<any>> -> memref<1x128xf32, #tpu.memory_space<any>>
      %c11_i32_44 = arith.constant 11 : i32
      %c0_i32_45 = arith.constant 0 : i32
      %72 = tpu.memref_slice %arg6[%c11_i32_44, %c0_i32_45] : memref<16x128xf32, #tpu.memory_space<vmem>> -> memref<1x128xf32, #tpu.memory_space<vmem>>
      %73 = tpu.memref_slice %arg8[%c11_i32] : memref<16x!tpu.dma_semaphore, #tpu.memory_space<semaphore_mem>> -> memref<1x!tpu.dma_semaphore, #tpu.memory_space<semaphore_mem>>
      %74 = tpu.memref_squeeze %73 : memref<1x!tpu.dma_semaphore, #tpu.memory_space<semaphore_mem>> -> memref<!tpu.dma_semaphore, #tpu.memory_space<semaphore_mem>>
      tpu.enqueue_dma source(%71 : memref<1x128xf32, #tpu.memory_space<any>>) target(%72 : memref<1x128xf32, #tpu.memory_space<vmem>>) target_semaphore(%74 : memref<!tpu.dma_semaphore, #tpu.memory_space<semaphore_mem>>)
      %c12_i32 = arith.constant 12 : i32
      %c0_i32_46 = arith.constant 0 : i32
      %75 = tpu.memref_slice %arg2[%23, %c0_i32_46] : memref<64x128xf32, #tpu.memory_space<any>> -> memref<1x128xf32, #tpu.memory_space<any>>
      %c12_i32_47 = arith.constant 12 : i32
      %c0_i32_48 = arith.constant 0 : i32
      %76 = tpu.memref_slice %arg6[%c12_i32_47, %c0_i32_48] : memref<16x128xf32, #tpu.memory_space<vmem>> -> memref<1x128xf32, #tpu.memory_space<vmem>>
      %77 = tpu.memref_slice %arg8[%c12_i32] : memref<16x!tpu.dma_semaphore, #tpu.memory_space<semaphore_mem>> -> memref<1x!tpu.dma_semaphore, #tpu.memory_space<semaphore_mem>>
      %78 = tpu.memref_squeeze %77 : memref<1x!tpu.dma_semaphore, #tpu.memory_space<semaphore_mem>> -> memref<!tpu.dma_semaphore, #tpu.memory_space<semaphore_mem>>
      tpu.enqueue_dma source(%75 : memref<1x128xf32, #tpu.memory_space<any>>) target(%76 : memref<1x128xf32, #tpu.memory_space<vmem>>) target_semaphore(%78 : memref<!tpu.dma_semaphore, #tpu.memory_space<semaphore_mem>>)
      %c13_i32 = arith.constant 13 : i32
      %c0_i32_49 = arith.constant 0 : i32
      %79 = tpu.memref_slice %arg2[%24, %c0_i32_49] : memref<64x128xf32, #tpu.memory_space<any>> -> memref<1x128xf32, #tpu.memory_space<any>>
      %c13_i32_50 = arith.constant 13 : i32
      %c0_i32_51 = arith.constant 0 : i32
      %80 = tpu.memref_slice %arg6[%c13_i32_50, %c0_i32_51] : memref<16x128xf32, #tpu.memory_space<vmem>> -> memref<1x128xf32, #tpu.memory_space<vmem>>
      %81 = tpu.memref_slice %arg8[%c13_i32] : memref<16x!tpu.dma_semaphore, #tpu.memory_space<semaphore_mem>> -> memref<1x!tpu.dma_semaphore, #tpu.memory_space<semaphore_mem>>
      %82 = tpu.memref_squeeze %81 : memref<1x!tpu.dma_semaphore, #tpu.memory_space<semaphore_mem>> -> memref<!tpu.dma_semaphore, #tpu.memory_space<semaphore_mem>>
      tpu.enqueue_dma source(%79 : memref<1x128xf32, #tpu.memory_space<any>>) target(%80 : memref<1x128xf32, #tpu.memory_space<vmem>>) target_semaphore(%82 : memref<!tpu.dma_semaphore, #tpu.memory_space<semaphore_mem>>)
      %c14_i32 = arith.constant 14 : i32
      %c0_i32_52 = arith.constant 0 : i32
      %83 = tpu.memref_slice %arg2[%25, %c0_i32_52] : memref<64x128xf32, #tpu.memory_space<any>> -> memref<1x128xf32, #tpu.memory_space<any>>
      %c14_i32_53 = arith.constant 14 : i32
      %c0_i32_54 = arith.constant 0 : i32
      %84 = tpu.memref_slice %arg6[%c14_i32_53, %c0_i32_54] : memref<16x128xf32, #tpu.memory_space<vmem>> -> memref<1x128xf32, #tpu.memory_space<vmem>>
      %85 = tpu.memref_slice %arg8[%c14_i32] : memref<16x!tpu.dma_semaphore, #tpu.memory_space<semaphore_mem>> -> memref<1x!tpu.dma_semaphore, #tpu.memory_space<semaphore_mem>>
      %86 = tpu.memref_squeeze %85 : memref<1x!tpu.dma_semaphore, #tpu.memory_space<semaphore_mem>> -> memref<!tpu.dma_semaphore, #tpu.memory_space<semaphore_mem>>
      tpu.enqueue_dma source(%83 : memref<1x128xf32, #tpu.memory_space<any>>) target(%84 : memref<1x128xf32, #tpu.memory_space<vmem>>) target_semaphore(%86 : memref<!tpu.dma_semaphore, #tpu.memory_space<semaphore_mem>>)
      %c15_i32 = arith.constant 15 : i32
      %c0_i32_55 = arith.constant 0 : i32
      %87 = tpu.memref_slice %arg2[%26, %c0_i32_55] : memref<64x128xf32, #tpu.memory_space<any>> -> memref<1x128xf32, #tpu.memory_space<any>>
      %c15_i32_56 = arith.constant 15 : i32
      %c0_i32_57 = arith.constant 0 : i32
      %88 = tpu.memref_slice %arg6[%c15_i32_56, %c0_i32_57] : memref<16x128xf32, #tpu.memory_space<vmem>> -> memref<1x128xf32, #tpu.memory_space<vmem>>
      %89 = tpu.memref_slice %arg8[%c15_i32] : memref<16x!tpu.dma_semaphore, #tpu.memory_space<semaphore_mem>> -> memref<1x!tpu.dma_semaphore, #tpu.memory_space<semaphore_mem>>
      %90 = tpu.memref_squeeze %89 : memref<1x!tpu.dma_semaphore, #tpu.memory_space<semaphore_mem>> -> memref<!tpu.dma_semaphore, #tpu.memory_space<semaphore_mem>>
      tpu.enqueue_dma source(%87 : memref<1x128xf32, #tpu.memory_space<any>>) target(%88 : memref<1x128xf32, #tpu.memory_space<vmem>>) target_semaphore(%90 : memref<!tpu.dma_semaphore, #tpu.memory_space<semaphore_mem>>)
      %c0_i32_58 = arith.constant 0 : i32
      %c0_i32_59 = arith.constant 0 : i32
      %91 = tpu.memref_slice %arg2[%11, %c0_i32_59] : memref<64x128xf32, #tpu.memory_space<any>> -> memref<1x128xf32, #tpu.memory_space<any>>
      %c0_i32_60 = arith.constant 0 : i32
      %c0_i32_61 = arith.constant 0 : i32
      %92 = tpu.memref_slice %arg6[%c0_i32_60, %c0_i32_61] : memref<16x128xf32, #tpu.memory_space<vmem>> -> memref<1x128xf32, #tpu.memory_space<vmem>>
      %93 = tpu.memref_slice %arg8[%c0_i32_58] : memref<16x!tpu.dma_semaphore, #tpu.memory_space<semaphore_mem>> -> memref<1x!tpu.dma_semaphore, #tpu.memory_space<semaphore_mem>>
      %94 = tpu.memref_squeeze %93 : memref<1x!tpu.dma_semaphore, #tpu.memory_space<semaphore_mem>> -> memref<!tpu.dma_semaphore, #tpu.memory_space<semaphore_mem>>
      tpu.wait_dma2 semaphore(%94 : memref<!tpu.dma_semaphore, #tpu.memory_space<semaphore_mem>>) src(%91 : memref<1x128xf32, #tpu.memory_space<any>>) dst(%92 : memref<1x128xf32, #tpu.memory_space<vmem>>)
      %c1_i32_62 = arith.constant 1 : i32
      %c0_i32_63 = arith.constant 0 : i32
      %95 = tpu.memref_slice %arg2[%12, %c0_i32_63] : memref<64x128xf32, #tpu.memory_space<any>> -> memref<1x128xf32, #tpu.memory_space<any>>
      %c1_i32_64 = arith.constant 1 : i32
      %c0_i32_65 = arith.constant 0 : i32
      %96 = tpu.memref_slice %arg6[%c1_i32_64, %c0_i32_65] : memref<16x128xf32, #tpu.memory_space<vmem>> -> memref<1x128xf32, #tpu.memory_space<vmem>>
      %97 = tpu.memref_slice %arg8[%c1_i32_62] : memref<16x!tpu.dma_semaphore, #tpu.memory_space<semaphore_mem>> -> memref<1x!tpu.dma_semaphore, #tpu.memory_space<semaphore_mem>>
      %98 = tpu.memref_squeeze %97 : memref<1x!tpu.dma_semaphore, #tpu.memory_space<semaphore_mem>> -> memref<!tpu.dma_semaphore, #tpu.memory_space<semaphore_mem>>
      tpu.wait_dma2 semaphore(%98 : memref<!tpu.dma_semaphore, #tpu.memory_space<semaphore_mem>>) src(%95 : memref<1x128xf32, #tpu.memory_space<any>>) dst(%96 : memref<1x128xf32, #tpu.memory_space<vmem>>)
      %c2_i32_66 = arith.constant 2 : i32
      %c0_i32_67 = arith.constant 0 : i32
      %99 = tpu.memref_slice %arg2[%13, %c0_i32_67] : memref<64x128xf32, #tpu.memory_space<any>> -> memref<1x128xf32, #tpu.memory_space<any>>
      %c2_i32_68 = arith.constant 2 : i32
      %c0_i32_69 = arith.constant 0 : i32
      %100 = tpu.memref_slice %arg6[%c2_i32_68, %c0_i32_69] : memref<16x128xf32, #tpu.memory_space<vmem>> -> memref<1x128xf32, #tpu.memory_space<vmem>>
      %101 = tpu.memref_slice %arg8[%c2_i32_66] : memref<16x!tpu.dma_semaphore, #tpu.memory_space<semaphore_mem>> -> memref<1x!tpu.dma_semaphore, #tpu.memory_space<semaphore_mem>>
      %102 = tpu.memref_squeeze %101 : memref<1x!tpu.dma_semaphore, #tpu.memory_space<semaphore_mem>> -> memref<!tpu.dma_semaphore, #tpu.memory_space<semaphore_mem>>
      tpu.wait_dma2 semaphore(%102 : memref<!tpu.dma_semaphore, #tpu.memory_space<semaphore_mem>>) src(%99 : memref<1x128xf32, #tpu.memory_space<any>>) dst(%100 : memref<1x128xf32, #tpu.memory_space<vmem>>)
      %c3_i32_70 = arith.constant 3 : i32
      %c0_i32_71 = arith.constant 0 : i32
      %103 = tpu.memref_slice %arg2[%14, %c0_i32_71] : memref<64x128xf32, #tpu.memory_space<any>> -> memref<1x128xf32, #tpu.memory_space<any>>
      %c3_i32_72 = arith.constant 3 : i32
      %c0_i32_73 = arith.constant 0 : i32
      %104 = tpu.memref_slice %arg6[%c3_i32_72, %c0_i32_73] : memref<16x128xf32, #tpu.memory_space<vmem>> -> memref<1x128xf32, #tpu.memory_space<vmem>>
      %105 = tpu.memref_slice %arg8[%c3_i32_70] : memref<16x!tpu.dma_semaphore, #tpu.memory_space<semaphore_mem>> -> memref<1x!tpu.dma_semaphore, #tpu.memory_space<semaphore_mem>>
      %106 = tpu.memref_squeeze %105 : memref<1x!tpu.dma_semaphore, #tpu.memory_space<semaphore_mem>> -> memref<!tpu.dma_semaphore, #tpu.memory_space<semaphore_mem>>
      tpu.wait_dma2 semaphore(%106 : memref<!tpu.dma_semaphore, #tpu.memory_space<semaphore_mem>>) src(%103 : memref<1x128xf32, #tpu.memory_space<any>>) dst(%104 : memref<1x128xf32, #tpu.memory_space<vmem>>)
      %c4_i32_74 = arith.constant 4 : i32
      %c0_i32_75 = arith.constant 0 : i32
      %107 = tpu.memref_slice %arg2[%15, %c0_i32_75] : memref<64x128xf32, #tpu.memory_space<any>> -> memref<1x128xf32, #tpu.memory_space<any>>
      %c4_i32_76 = arith.constant 4 : i32
      %c0_i32_77 = arith.constant 0 : i32
      %108 = tpu.memref_slice %arg6[%c4_i32_76, %c0_i32_77] : memref<16x128xf32, #tpu.memory_space<vmem>> -> memref<1x128xf32, #tpu.memory_space<vmem>>
      %109 = tpu.memref_slice %arg8[%c4_i32_74] : memref<16x!tpu.dma_semaphore, #tpu.memory_space<semaphore_mem>> -> memref<1x!tpu.dma_semaphore, #tpu.memory_space<semaphore_mem>>
      %110 = tpu.memref_squeeze %109 : memref<1x!tpu.dma_semaphore, #tpu.memory_space<semaphore_mem>> -> memref<!tpu.dma_semaphore, #tpu.memory_space<semaphore_mem>>
      tpu.wait_dma2 semaphore(%110 : memref<!tpu.dma_semaphore, #tpu.memory_space<semaphore_mem>>) src(%107 : memref<1x128xf32, #tpu.memory_space<any>>) dst(%108 : memref<1x128xf32, #tpu.memory_space<vmem>>)
      %c5_i32_78 = arith.constant 5 : i32
      %c0_i32_79 = arith.constant 0 : i32
      %111 = tpu.memref_slice %arg2[%16, %c0_i32_79] : memref<64x128xf32, #tpu.memory_space<any>> -> memref<1x128xf32, #tpu.memory_space<any>>
      %c5_i32_80 = arith.constant 5 : i32
      %c0_i32_81 = arith.constant 0 : i32
      %112 = tpu.memref_slice %arg6[%c5_i32_80, %c0_i32_81] : memref<16x128xf32, #tpu.memory_space<vmem>> -> memref<1x128xf32, #tpu.memory_space<vmem>>
      %113 = tpu.memref_slice %arg8[%c5_i32_78] : memref<16x!tpu.dma_semaphore, #tpu.memory_space<semaphore_mem>> -> memref<1x!tpu.dma_semaphore, #tpu.memory_space<semaphore_mem>>
      %114 = tpu.memref_squeeze %113 : memref<1x!tpu.dma_semaphore, #tpu.memory_space<semaphore_mem>> -> memref<!tpu.dma_semaphore, #tpu.memory_space<semaphore_mem>>
      tpu.wait_dma2 semaphore(%114 : memref<!tpu.dma_semaphore, #tpu.memory_space<semaphore_mem>>) src(%111 : memref<1x128xf32, #tpu.memory_space<any>>) dst(%112 : memref<1x128xf32, #tpu.memory_space<vmem>>)
      %c6_i32_82 = arith.constant 6 : i32
      %c0_i32_83 = arith.constant 0 : i32
      %115 = tpu.memref_slice %arg2[%17, %c0_i32_83] : memref<64x128xf32, #tpu.memory_space<any>> -> memref<1x128xf32, #tpu.memory_space<any>>
      %c6_i32_84 = arith.constant 6 : i32
      %c0_i32_85 = arith.constant 0 : i32
      %116 = tpu.memref_slice %arg6[%c6_i32_84, %c0_i32_85] : memref<16x128xf32, #tpu.memory_space<vmem>> -> memref<1x128xf32, #tpu.memory_space<vmem>>
      %117 = tpu.memref_slice %arg8[%c6_i32_82] : memref<16x!tpu.dma_semaphore, #tpu.memory_space<semaphore_mem>> -> memref<1x!tpu.dma_semaphore, #tpu.memory_space<semaphore_mem>>
      %118 = tpu.memref_squeeze %117 : memref<1x!tpu.dma_semaphore, #tpu.memory_space<semaphore_mem>> -> memref<!tpu.dma_semaphore, #tpu.memory_space<semaphore_mem>>
      tpu.wait_dma2 semaphore(%118 : memref<!tpu.dma_semaphore, #tpu.memory_space<semaphore_mem>>) src(%115 : memref<1x128xf32, #tpu.memory_space<any>>) dst(%116 : memref<1x128xf32, #tpu.memory_space<vmem>>)
      %c7_i32_86 = arith.constant 7 : i32
      %c0_i32_87 = arith.constant 0 : i32
      %119 = tpu.memref_slice %arg2[%18, %c0_i32_87] : memref<64x128xf32, #tpu.memory_space<any>> -> memref<1x128xf32, #tpu.memory_space<any>>
      %c7_i32_88 = arith.constant 7 : i32
      %c0_i32_89 = arith.constant 0 : i32
      %120 = tpu.memref_slice %arg6[%c7_i32_88, %c0_i32_89] : memref<16x128xf32, #tpu.memory_space<vmem>> -> memref<1x128xf32, #tpu.memory_space<vmem>>
      %121 = tpu.memref_slice %arg8[%c7_i32_86] : memref<16x!tpu.dma_semaphore, #tpu.memory_space<semaphore_mem>> -> memref<1x!tpu.dma_semaphore, #tpu.memory_space<semaphore_mem>>
      %122 = tpu.memref_squeeze %121 : memref<1x!tpu.dma_semaphore, #tpu.memory_space<semaphore_mem>> -> memref<!tpu.dma_semaphore, #tpu.memory_space<semaphore_mem>>
      tpu.wait_dma2 semaphore(%122 : memref<!tpu.dma_semaphore, #tpu.memory_space<semaphore_mem>>) src(%119 : memref<1x128xf32, #tpu.memory_space<any>>) dst(%120 : memref<1x128xf32, #tpu.memory_space<vmem>>)
      %c8_i32_90 = arith.constant 8 : i32
      %c0_i32_91 = arith.constant 0 : i32
      %123 = tpu.memref_slice %arg2[%19, %c0_i32_91] : memref<64x128xf32, #tpu.memory_space<any>> -> memref<1x128xf32, #tpu.memory_space<any>>
      %c8_i32_92 = arith.constant 8 : i32
      %c0_i32_93 = arith.constant 0 : i32
      %124 = tpu.memref_slice %arg6[%c8_i32_92, %c0_i32_93] : memref<16x128xf32, #tpu.memory_space<vmem>> -> memref<1x128xf32, #tpu.memory_space<vmem>>
      %125 = tpu.memref_slice %arg8[%c8_i32_90] : memref<16x!tpu.dma_semaphore, #tpu.memory_space<semaphore_mem>> -> memref<1x!tpu.dma_semaphore, #tpu.memory_space<semaphore_mem>>
      %126 = tpu.memref_squeeze %125 : memref<1x!tpu.dma_semaphore, #tpu.memory_space<semaphore_mem>> -> memref<!tpu.dma_semaphore, #tpu.memory_space<semaphore_mem>>
      tpu.wait_dma2 semaphore(%126 : memref<!tpu.dma_semaphore, #tpu.memory_space<semaphore_mem>>) src(%123 : memref<1x128xf32, #tpu.memory_space<any>>) dst(%124 : memref<1x128xf32, #tpu.memory_space<vmem>>)
      %c9_i32_94 = arith.constant 9 : i32
      %c0_i32_95 = arith.constant 0 : i32
      %127 = tpu.memref_slice %arg2[%20, %c0_i32_95] : memref<64x128xf32, #tpu.memory_space<any>> -> memref<1x128xf32, #tpu.memory_space<any>>
      %c9_i32_96 = arith.constant 9 : i32
      %c0_i32_97 = arith.constant 0 : i32
      %128 = tpu.memref_slice %arg6[%c9_i32_96, %c0_i32_97] : memref<16x128xf32, #tpu.memory_space<vmem>> -> memref<1x128xf32, #tpu.memory_space<vmem>>
      %129 = tpu.memref_slice %arg8[%c9_i32_94] : memref<16x!tpu.dma_semaphore, #tpu.memory_space<semaphore_mem>> -> memref<1x!tpu.dma_semaphore, #tpu.memory_space<semaphore_mem>>
      %130 = tpu.memref_squeeze %129 : memref<1x!tpu.dma_semaphore, #tpu.memory_space<semaphore_mem>> -> memref<!tpu.dma_semaphore, #tpu.memory_space<semaphore_mem>>
      tpu.wait_dma2 semaphore(%130 : memref<!tpu.dma_semaphore, #tpu.memory_space<semaphore_mem>>) src(%127 : memref<1x128xf32, #tpu.memory_space<any>>) dst(%128 : memref<1x128xf32, #tpu.memory_space<vmem>>)
      %c10_i32_98 = arith.constant 10 : i32
      %c0_i32_99 = arith.constant 0 : i32
      %131 = tpu.memref_slice %arg2[%21, %c0_i32_99] : memref<64x128xf32, #tpu.memory_space<any>> -> memref<1x128xf32, #tpu.memory_space<any>>
      %c10_i32_100 = arith.constant 10 : i32
      %c0_i32_101 = arith.constant 0 : i32
      %132 = tpu.memref_slice %arg6[%c10_i32_100, %c0_i32_101] : memref<16x128xf32, #tpu.memory_space<vmem>> -> memref<1x128xf32, #tpu.memory_space<vmem>>
      %133 = tpu.memref_slice %arg8[%c10_i32_98] : memref<16x!tpu.dma_semaphore, #tpu.memory_space<semaphore_mem>> -> memref<1x!tpu.dma_semaphore, #tpu.memory_space<semaphore_mem>>
      %134 = tpu.memref_squeeze %133 : memref<1x!tpu.dma_semaphore, #tpu.memory_space<semaphore_mem>> -> memref<!tpu.dma_semaphore, #tpu.memory_space<semaphore_mem>>
      tpu.wait_dma2 semaphore(%134 : memref<!tpu.dma_semaphore, #tpu.memory_space<semaphore_mem>>) src(%131 : memref<1x128xf32, #tpu.memory_space<any>>) dst(%132 : memref<1x128xf32, #tpu.memory_space<vmem>>)
      %c11_i32_102 = arith.constant 11 : i32
      %c0_i32_103 = arith.constant 0 : i32
      %135 = tpu.memref_slice %arg2[%22, %c0_i32_103] : memref<64x128xf32, #tpu.memory_space<any>> -> memref<1x128xf32, #tpu.memory_space<any>>
      %c11_i32_104 = arith.constant 11 : i32
      %c0_i32_105 = arith.constant 0 : i32
      %136 = tpu.memref_slice %arg6[%c11_i32_104, %c0_i32_105] : memref<16x128xf32, #tpu.memory_space<vmem>> -> memref<1x128xf32, #tpu.memory_space<vmem>>
      %137 = tpu.memref_slice %arg8[%c11_i32_102] : memref<16x!tpu.dma_semaphore, #tpu.memory_space<semaphore_mem>> -> memref<1x!tpu.dma_semaphore, #tpu.memory_space<semaphore_mem>>
      %138 = tpu.memref_squeeze %137 : memref<1x!tpu.dma_semaphore, #tpu.memory_space<semaphore_mem>> -> memref<!tpu.dma_semaphore, #tpu.memory_space<semaphore_mem>>
      tpu.wait_dma2 semaphore(%138 : memref<!tpu.dma_semaphore, #tpu.memory_space<semaphore_mem>>) src(%135 : memref<1x128xf32, #tpu.memory_space<any>>) dst(%136 : memref<1x128xf32, #tpu.memory_space<vmem>>)
      %c12_i32_106 = arith.constant 12 : i32
      %c0_i32_107 = arith.constant 0 : i32
      %139 = tpu.memref_slice %arg2[%23, %c0_i32_107] : memref<64x128xf32, #tpu.memory_space<any>> -> memref<1x128xf32, #tpu.memory_space<any>>
      %c12_i32_108 = arith.constant 12 : i32
      %c0_i32_109 = arith.constant 0 : i32
      %140 = tpu.memref_slice %arg6[%c12_i32_108, %c0_i32_109] : memref<16x128xf32, #tpu.memory_space<vmem>> -> memref<1x128xf32, #tpu.memory_space<vmem>>
      %141 = tpu.memref_slice %arg8[%c12_i32_106] : memref<16x!tpu.dma_semaphore, #tpu.memory_space<semaphore_mem>> -> memref<1x!tpu.dma_semaphore, #tpu.memory_space<semaphore_mem>>
      %142 = tpu.memref_squeeze %141 : memref<1x!tpu.dma_semaphore, #tpu.memory_space<semaphore_mem>> -> memref<!tpu.dma_semaphore, #tpu.memory_space<semaphore_mem>>
      tpu.wait_dma2 semaphore(%142 : memref<!tpu.dma_semaphore, #tpu.memory_space<semaphore_mem>>) src(%139 : memref<1x128xf32, #tpu.memory_space<any>>) dst(%140 : memref<1x128xf32, #tpu.memory_space<vmem>>)
      %c13_i32_110 = arith.constant 13 : i32
      %c0_i32_111 = arith.constant 0 : i32
      %143 = tpu.memref_slice %arg2[%24, %c0_i32_111] : memref<64x128xf32, #tpu.memory_space<any>> -> memref<1x128xf32, #tpu.memory_space<any>>
      %c13_i32_112 = arith.constant 13 : i32
      %c0_i32_113 = arith.constant 0 : i32
      %144 = tpu.memref_slice %arg6[%c13_i32_112, %c0_i32_113] : memref<16x128xf32, #tpu.memory_space<vmem>> -> memref<1x128xf32, #tpu.memory_space<vmem>>
      %145 = tpu.memref_slice %arg8[%c13_i32_110] : memref<16x!tpu.dma_semaphore, #tpu.memory_space<semaphore_mem>> -> memref<1x!tpu.dma_semaphore, #tpu.memory_space<semaphore_mem>>
      %146 = tpu.memref_squeeze %145 : memref<1x!tpu.dma_semaphore, #tpu.memory_space<semaphore_mem>> -> memref<!tpu.dma_semaphore, #tpu.memory_space<semaphore_mem>>
      tpu.wait_dma2 semaphore(%146 : memref<!tpu.dma_semaphore, #tpu.memory_space<semaphore_mem>>) src(%143 : memref<1x128xf32, #tpu.memory_space<any>>) dst(%144 : memref<1x128xf32, #tpu.memory_space<vmem>>)
      %c14_i32_114 = arith.constant 14 : i32
      %c0_i32_115 = arith.constant 0 : i32
      %147 = tpu.memref_slice %arg2[%25, %c0_i32_115] : memref<64x128xf32, #tpu.memory_space<any>> -> memref<1x128xf32, #tpu.memory_space<any>>
      %c14_i32_116 = arith.constant 14 : i32
      %c0_i32_117 = arith.constant 0 : i32
      %148 = tpu.memref_slice %arg6[%c14_i32_116, %c0_i32_117] : memref<16x128xf32, #tpu.memory_space<vmem>> -> memref<1x128xf32, #tpu.memory_space<vmem>>
      %149 = tpu.memref_slice %arg8[%c14_i32_114] : memref<16x!tpu.dma_semaphore, #tpu.memory_space<semaphore_mem>> -> memref<1x!tpu.dma_semaphore, #tpu.memory_space<semaphore_mem>>
      %150 = tpu.memref_squeeze %149 : memref<1x!tpu.dma_semaphore, #tpu.memory_space<semaphore_mem>> -> memref<!tpu.dma_semaphore, #tpu.memory_space<semaphore_mem>>
      tpu.wait_dma2 semaphore(%150 : memref<!tpu.dma_semaphore, #tpu.memory_space<semaphore_mem>>) src(%147 : memref<1x128xf32, #tpu.memory_space<any>>) dst(%148 : memref<1x128xf32, #tpu.memory_space<vmem>>)
      %c15_i32_118 = arith.constant 15 : i32
      %c0_i32_119 = arith.constant 0 : i32
      %151 = tpu.memref_slice %arg2[%26, %c0_i32_119] : memref<64x128xf32, #tpu.memory_space<any>> -> memref<1x128xf32, #tpu.memory_space<any>>
      %c15_i32_120 = arith.constant 15 : i32
      %c0_i32_121 = arith.constant 0 : i32
      %152 = tpu.memref_slice %arg6[%c15_i32_120, %c0_i32_121] : memref<16x128xf32, #tpu.memory_space<vmem>> -> memref<1x128xf32, #tpu.memory_space<vmem>>
      %153 = tpu.memref_slice %arg8[%c15_i32_118] : memref<16x!tpu.dma_semaphore, #tpu.memory_space<semaphore_mem>> -> memref<1x!tpu.dma_semaphore, #tpu.memory_space<semaphore_mem>>
      %154 = tpu.memref_squeeze %153 : memref<1x!tpu.dma_semaphore, #tpu.memory_space<semaphore_mem>> -> memref<!tpu.dma_semaphore, #tpu.memory_space<semaphore_mem>>
      tpu.wait_dma2 semaphore(%154 : memref<!tpu.dma_semaphore, #tpu.memory_space<semaphore_mem>>) src(%151 : memref<1x128xf32, #tpu.memory_space<any>>) dst(%152 : memref<1x128xf32, #tpu.memory_space<vmem>>)
      %c0_122 = arith.constant 0 : index
      %c0_123 = arith.constant 0 : index
      %155 = vector.load %arg6[%c0_122, %c0_123] : memref<16x128xf32, #tpu.memory_space<vmem>>, vector<16x128xf32>
      %156 = arith.mulf %155, %155 : vector<16x128xf32>
      %cst_124 = arith.constant dense<0.000000e+00> : vector<16xf32>
      %157 = vector.multi_reduction <add>, %156, %cst_124 [1] : vector<16x128xf32> to vector<16xf32>
      %158 = vector.shape_cast %157 : vector<16xf32> to vector<16x1xf32>
      %159 = math.sqrt %158 : vector<16x1xf32>
      %cst_125 = arith.constant 1.000000e+00 : f32
      %160 = vector.broadcast %cst_125 : f32 to vector<16x1xf32>
      %161 = arith.cmpf ogt, %159, %160 : vector<16x1xf32>
      %cst_126 = arith.constant 1.000000e-07 : f32
      %162 = vector.broadcast %cst_126 : f32 to vector<16x1xf32>
      %163 = arith.addf %159, %162 : vector<16x1xf32>
      %164 = tpu.reciprocal %163 {approx = true} : vector<16x1xf32> -> vector<16x1xf32>
      %cst_127 = arith.constant 1.000000e+00 : f32
      %165 = vector.broadcast %cst_127 : f32 to vector<16x1xf32>
      %166 = arith.select %161, %164, %165 : vector<16x1xi1>, vector<16x1xf32>
      %167 = vector.broadcast %166 : vector<16x1xf32> to vector<16x128xf32>
      %168 = arith.mulf %155, %167 : vector<16x128xf32>
      %169 = vector.extract_strided_slice %168 {offsets = [0, 0], sizes = [2, 128], strides = [1, 1]} : vector<16x128xf32> to vector<2x128xf32>
      %170 = vector.extract_strided_slice %168 {offsets = [2, 0], sizes = [2, 128], strides = [1, 1]} : vector<16x128xf32> to vector<2x128xf32>
      %171 = arith.addf %169, %170 : vector<2x128xf32>
      %172 = vector.extract_strided_slice %168 {offsets = [4, 0], sizes = [2, 128], strides = [1, 1]} : vector<16x128xf32> to vector<2x128xf32>
      %173 = arith.addf %171, %172 : vector<2x128xf32>
      %174 = vector.extract_strided_slice %168 {offsets = [6, 0], sizes = [2, 128], strides = [1, 1]} : vector<16x128xf32> to vector<2x128xf32>
      %175 = arith.addf %173, %174 : vector<2x128xf32>
      %176 = vector.extract_strided_slice %168 {offsets = [8, 0], sizes = [2, 128], strides = [1, 1]} : vector<16x128xf32> to vector<2x128xf32>
      %177 = arith.addf %175, %176 : vector<2x128xf32>
      %178 = vector.extract_strided_slice %168 {offsets = [10, 0], sizes = [2, 128], strides = [1, 1]} : vector<16x128xf32> to vector<2x128xf32>
      %179 = arith.addf %177, %178 : vector<2x128xf32>
      %180 = vector.extract_strided_slice %168 {offsets = [12, 0], sizes = [2, 128], strides = [1, 1]} : vector<16x128xf32> to vector<2x128xf32>
      %181 = arith.addf %179, %180 : vector<2x128xf32>
      %182 = vector.extract_strided_slice %168 {offsets = [14, 0], sizes = [2, 128], strides = [1, 1]} : vector<16x128xf32> to vector<2x128xf32>
      %183 = arith.addf %181, %182 : vector<2x128xf32>
      %cst_128 = arith.constant 1.250000e-01 : f32
      %184 = vector.broadcast %cst_128 : f32 to vector<2x128xf32>
      %185 = arith.mulf %183, %184 : vector<2x128xf32>
      %cst_129 = arith.constant 0.000000e+00 : f32
      %186 = vector.broadcast %cst_129 : f32 to vector<8x128xf32>
      %c0_130 = arith.constant 0 : index
      %c0_131 = arith.constant 0 : index
      %187 = vector.load %arg7[%c0_130, %c0_131] : memref<8x128xf32, #tpu.memory_space<vmem>>, vector<8x128xf32>
      tpu.vector_store %arg7[%c0_130, %c0_131], %186 {strides = array<i32>} : memref<8x128xf32, #tpu.memory_space<vmem>>, vector<8x128xf32>,
      %c0_132 = arith.constant 0 : index
      %c0_133 = arith.constant 0 : index
      %188 = vector.load %arg7[%c0_132, %c0_133] : memref<8x128xf32, #tpu.memory_space<vmem>>, vector<2x128xf32>
      tpu.vector_store %arg7[%c0_132, %c0_133], %185 {strides = array<i32>} : memref<8x128xf32, #tpu.memory_space<vmem>>, vector<2x128xf32>,
    } else {
    }
    %c0 = arith.constant 0 : index
    %c0_1 = arith.constant 0 : index
    %3 = vector.load %arg7[%c0, %c0_1] : memref<8x128xf32, #tpu.memory_space<vmem>>, vector<8x128xf32>
    %4 = arith.truncf %3 : vector<8x128xf32> to vector<8x128xbf16>
    %c0_2 = arith.constant 0 : index
    %c0_3 = arith.constant 0 : index
    %5 = vector.load %arg3[%c0_2, %c0_3] : memref<128x128xbf16, #tpu.memory_space<vmem>>, vector<128x128xbf16>
    %cst = arith.constant dense<0.000000e+00> : vector<8x128xf32>
    %6 = tpu.matmul %4, %5, %cst {dimension_numbers = #tpu.dot_dimension_numbers<[1], [0], [0], [1], [0, 0, 1, 1], [], []>} : vector<8x128xbf16>, vector<128x128xbf16>, vector<8x128xf32> -> vector<8x128xf32>
    %c0_4 = arith.constant 0 : index
    %c0_5 = arith.constant 0 : index
    %7 = vector.load %arg4[%c0_4, %c0_5] : memref<1x128xf32, #tpu.memory_space<vmem>>, vector<1x128xf32>
    %8 = vector.broadcast %7 : vector<1x128xf32> to vector<8x128xf32>
    %9 = arith.addf %6, %8 : vector<8x128xf32>
    %c0_6 = arith.constant 0 : index
    %c0_7 = arith.constant 0 : index
    %10 = vector.load %arg5[%c0_6, %c0_7] : memref<8x128xf32, #tpu.memory_space<vmem>>, vector<8x128xf32>
    tpu.vector_store %arg5[%c0_6, %c0_7], %9 {strides = array<i32>} : memref<8x128xf32, #tpu.memory_space<vmem>>, vector<8x128xf32>,
    return
  }
  func.func @transform_1(%arg0: i32, %arg1: memref<16xi32, #tpu.memory_space<smem>>) -> (i32, i32) {
    %c0_i32 = arith.constant 0 : i32
    %c0_i32_0 = arith.constant 0 : i32
    return %c0_i32, %arg0 : i32, i32
  }
  func.func @transform_2(%arg0: i32, %arg1: memref<16xi32, #tpu.memory_space<smem>>) -> (i32, i32) {
    %c0_i32 = arith.constant 0 : i32
    %c0_i32_0 = arith.constant 0 : i32
    return %c0_i32, %arg0 : i32, i32
  }
  func.func @transform_3(%arg0: i32, %arg1: memref<16xi32, #tpu.memory_space<smem>>) -> (i32, i32) {
    %c0_i32 = arith.constant 0 : i32
    %c0_i32_0 = arith.constant 0 : i32
    return %c0_i32, %arg0 : i32, i32
  }
}

</mosaic_0001>

<llo_original>
// kernel: tpu_custom_call.1
$region0: #{tpu_custom_call.1}
  #allocation0 [shape = 'u32[]', space=smem, size = 0x4, offset = 0x4, fixed_abs, tag = 'smem constant byte address 0x4 - core index']
  #allocation1 [shape = 'u32[144,128]{1,0:T(1,128)}', space=vmem, size = 0x12000, scoped, tag = 'internal scratch']
  #allocation2 [shape = 'f32[16,128]{1,0:T(8,128)}', space=vmem, size = 0x2000, scoped, tag = 'scratch operand']
  #allocation3 [shape = 'f32[8,128]{1,0:T(8,128)}', space=vmem, size = 0x1000, scoped, tag = 'scratch operand']
  #allocation4 [shape = 's32[16]{0}', space=sflag, size = 0x40, scoped, tag = 'scratch operand']
  #allocation5 [shape = 's32[1]{0}', space=sflag, size = 0x4, scoped, tag = 'scoped memory for tpu_custom_call.1']
  #allocation6 [shape = 'u8[512]{0}', space=smem, size = 0x200, scoped, tag = 'prefetched SMEM operand 0']
  #allocation11 [shape = 's32[]', space=sflag, size = 0x4, offset = 0, fixed_abs, tag = 'sflag constant byte address 0x0 - dummy sync flag']
  #allocation12 [shape = 's32[]', space=sflag, size = 0x4, offset = 0, fixed_abs, tag = 'sflag constant byte address 0x0 - dummy sync flag']
  #allocation13 [shape = 'u32[]', space=smem, size = 0x4, offset = 0x44, fixed_abs, tag = 'smem constant byte address 0x44 - assertion arg 0']
  #allocation14 [shape = 'u32[]', space=smem, size = 0x4, offset = 0x48, fixed_abs, tag = 'smem constant byte address 0x48 - assertion arg 1']
  #allocation15 [shape = 's32[]', space=sflag, size = 0x4, offset = 0, fixed_abs, tag = 'sflag constant byte address 0x0 - dummy sync flag']
  #allocation16 [shape = 's32[]', space=sflag, size = 0x4, offset = 0, fixed_abs, tag = 'sflag constant byte address 0x0 - dummy sync flag']
  #allocation17 [shape = 's32[]', space=sflag, size = 0x4, offset = 0, fixed_abs, tag = 'sflag constant byte address 0x0 - dummy sync flag']
  #allocation18 [shape = 's32[]', space=sflag, size = 0x4, offset = 0, fixed_abs, tag = 'sflag constant byte address 0x0 - dummy sync flag']
  #allocation19 [shape = 's32[]', space=sflag, size = 0x4, offset = 0, fixed_abs, tag = 'sflag constant byte address 0x0 - dummy sync flag']
  #allocation20 [shape = 's32[]', space=sflag, size = 0x4, offset = 0, fixed_abs, tag = 'sflag constant byte address 0x0 - dummy sync flag']
  #allocation21 [shape = 's32[]', space=sflag, size = 0x4, offset = 0, fixed_abs, tag = 'sflag constant byte address 0x0 - dummy sync flag']
  #allocation22 [shape = 's32[]', space=sflag, size = 0x4, offset = 0, fixed_abs, tag = 'sflag constant byte address 0x0 - dummy sync flag']
  #allocation23 [shape = 's32[]', space=sflag, size = 0x4, offset = 0, fixed_abs, tag = 'sflag constant byte address 0x0 - dummy sync flag']
  #allocation24 [shape = 's32[]', space=sflag, size = 0x4, offset = 0, fixed_abs, tag = 'sflag constant byte address 0x0 - dummy sync flag']
  #allocation25 [shape = 's32[]', space=sflag, size = 0x4, offset = 0, fixed_abs, tag = 'sflag constant byte address 0x0 - dummy sync flag']
  #allocation26 [shape = 's32[]', space=sflag, size = 0x4, offset = 0, fixed_abs, tag = 'sflag constant byte address 0x0 - dummy sync flag']
  #allocation27 [shape = 's32[]', space=sflag, size = 0x4, offset = 0, fixed_abs, tag = 'sflag constant byte address 0x0 - dummy sync flag']
  #allocation28 [shape = 's32[]', space=sflag, size = 0x4, offset = 0, fixed_abs, tag = 'sflag constant byte address 0x0 - dummy sync flag']
  #allocation29 [shape = 's32[]', space=sflag, size = 0x4, offset = 0, fixed_abs, tag = 'sflag constant byte address 0x0 - dummy sync flag']
  #allocation30 [shape = 's32[]', space=sflag, size = 0x4, offset = 0, fixed_abs, tag = 'sflag constant byte address 0x0 - dummy sync flag']
  #allocation31 [shape = 's32[]', space=sflag, size = 0x4, offset = 0, fixed_abs, tag = 'sflag constant byte address 0x0 - dummy sync flag']
  #allocation32 [shape = 's32[]', space=sflag, size = 0x4, offset = 0, fixed_abs, tag = 'sflag constant byte address 0x0 - dummy sync flag']
  #allocation33 [shape = 's32[]', space=sflag, size = 0x4, offset = 0, fixed_abs, tag = 'sflag constant byte address 0x0 - dummy sync flag']
  #allocation34 [shape = 's32[]', space=sflag, size = 0x4, offset = 0, fixed_abs, tag = 'sflag constant byte address 0x0 - dummy sync flag']
  #allocation35 [shape = 's32[]', space=sflag, size = 0x4, offset = 0, fixed_abs, tag = 'sflag constant byte address 0x0 - dummy sync flag']
  #allocation36 [shape = 's32[]', space=sflag, size = 0x4, offset = 0, fixed_abs, tag = 'sflag constant byte address 0x0 - dummy sync flag']
  #allocation37 [shape = 's32[]', space=sflag, size = 0x4, offset = 0, fixed_abs, tag = 'sflag constant byte address 0x0 - dummy sync flag']
  #allocation38 [shape = 's32[]', space=sflag, size = 0x4, offset = 0, fixed_abs, tag = 'sflag constant byte address 0x0 - dummy sync flag']
  #allocation39 [shape = 's32[]', space=sflag, size = 0x4, offset = 0, fixed_abs, tag = 'sflag constant byte address 0x0 - dummy sync flag']
  #allocation40 [shape = 's32[]', space=sflag, size = 0x4, offset = 0, fixed_abs, tag = 'sflag constant byte address 0x0 - dummy sync flag']
  #allocation41 [shape = 's32[]', space=sflag, size = 0x4, offset = 0, fixed_abs, tag = 'sflag constant byte address 0x0 - dummy sync flag']
  #allocation42 [shape = 's32[]', space=sflag, size = 0x4, offset = 0, fixed_abs, tag = 'sflag constant byte address 0x0 - dummy sync flag']
  #allocation43 [shape = 's32[]', space=sflag, size = 0x4, offset = 0, fixed_abs, tag = 'sflag constant byte address 0x0 - dummy sync flag']
  #allocation44 [shape = 's32[]', space=sflag, size = 0x4, offset = 0, fixed_abs, tag = 'sflag constant byte address 0x0 - dummy sync flag']
  %s0 = inlined_call_operand.hbm [shape: s32[16], index: 0, kind: input, shape index: {}]
  %s1 = inlined_call_operand.hbm [shape: f32[64,128], index: 1, kind: input, shape index: {}]
  %s2 = inlined_call_operand.hbm [shape: bf16[128,128], index: 2, kind: input, shape index: {}]
  %s3 = inlined_call_operand.vmem [shape: f32[1,128], index: 3, kind: input, shape index: {}]
  %s4 = inlined_call_operand.hbm [shape: f32[8,128], index: 4, kind: output, shape index: {}]
  %s5 = sld [smem:[#allocation0]]
  $region90: #{tpu_custom_call.1} parent=0
    _
  %s7 = ssub.s32 1, %s5
  %s8 = scalar_select 0, %s7, %s5
  %10 = dma.hbm_to_smem %s0, 16, [#allocation6], [#allocation5]
  %11 = dma.done [#allocation5], 16
  %12 = sfence
  $region1: #{tpu_custom_call.1} parent=0
    #allocation7 [shape = 'u8[32768]{0}', space=vmem, size = 0x8000, scoped, tag = 'input window, operand 2, single buffered']
    #allocation8 [shape = 's32[1]{0}', space=sflag, size = 0x4, scoped, tag = 'scoped memory for tpu_custom_call.1']
    #allocation9 [shape = 's32[1]{0}', space=sflag, size = 0x4, scoped, tag = 'scoped memory for tpu_custom_call.1']
    #allocation10 [shape = 'u8[4096]{0}', space=vmem, size = 0x1000, scoped, tag = 'output window, operand 0, single buffered']
    %13 = vsyncpa [#allocation8], 0
    %14 = vsyncpa [#allocation9], 0
    // Predicated region
    $region2: #{tpu_custom_call.1} parent=1 // pred_check
      _
    $region3: #{tpu_custom_call.1} parent=1 // pred_check_branch
      %16 = sbr.rel (0) target = $region5
    $region4: #{tpu_custom_call.1} parent=1 // pred_region
      %s18 = ssub.s32 1024, 1024
      %19 = vsyncadd [#allocation8], %s18
      %s20 = sshll.u32 [#allocation7], 4
      %s21 = int_to_ptr.vmem [resolvable:$true] %s20
      %26 = dma.hbm_to_vmem [thread:$0]  %s2, 1024, %s21, [#allocation8], 64, 64, 4
    $region5: #{tpu_custom_call.1} parent=1 // pred_fallthru
      _
    // Predicated region
    $region6: #{tpu_custom_call.1} parent=1 // pred_check
      _
    $region7: #{tpu_custom_call.1} parent=1 // pred_check_branch
      %28 = sbr.rel (0) target = $region9
    $region8: #{tpu_custom_call.1} parent=1 // pred_region
      _
    $region9: #{tpu_custom_call.1} parent=1 // pred_fallthru
      _
    // Predicated region
    $region10: #{tpu_custom_call.1} parent=1 // pred_check
      _
    $region11: #{tpu_custom_call.1} parent=1 // pred_check_branch
      %30 = sbr.rel (0) target = $region13
    $region12: #{tpu_custom_call.1} parent=1 // pred_region
      %31 = dma.done [#allocation8], 1024
    $region13: #{tpu_custom_call.1} parent=1 // pred_fallthru
      _
    %p33 = scmp.eq.s32.totalorder 0, 0
    // Predicated region
    $region14: #{tpu_custom_call.1} parent=1 // pred_check
      %p34 = pneg %p33
    $region15: #{tpu_custom_call.1} parent=1 // pred_check_branch
      %36 = sbr.rel (%p34) target = $region17
    $region16: #{tpu_custom_call.1} parent=1 // pred_region
      %s37 = sld [smem:[#allocation6]]
      %s38 = sld [smem:[#allocation6 + $0x1]]
      %s39 = sld [smem:[#allocation6 + $0x2]]
      %s40 = sld [smem:[#allocation6 + $0x3]]
      %s41 = sld [smem:[#allocation6 + $0x4]]
      %s42 = sld [smem:[#allocation6 + $0x5]]
      %s43 = sld [smem:[#allocation6 + $0x6]]
      %s44 = sld [smem:[#allocation6 + $0x7]]
      %s45 = sld [smem:[#allocation6 + $0x8]]
      %s46 = sld [smem:[#allocation6 + $0x9]]
      %s47 = sld [smem:[#allocation6 + $0xa]]
      %s48 = sld [smem:[#allocation6 + $0xb]]
      %s49 = sld [smem:[#allocation6 + $0xc]]
      %s50 = sld [smem:[#allocation6 + $0xd]]
      %s51 = sld [smem:[#allocation6 + $0xe]]
      %s52 = sld [smem:[#allocation6 + $0xf]]
      %s53 = smul.addr %s37, 16
      %s54 = scalar_lea.hbm %s1, %s53
      // Predicated region
      $region18: #{tpu_custom_call.1} parent=16 // pred_check
        _
      $region19: #{tpu_custom_call.1} parent=16 // pred_check_branch
        %56 = sbr.rel target = $region21
      $region20: #{tpu_custom_call.1} parent=16 // pred_region
        %57 = sst [smem:[#allocation13]] [#allocation12]
        %58 = sst [smem:[#allocation14]] [#allocation11]
      $region21: #{tpu_custom_call.1} parent=16 // pred_fallthru
        _
      %60 = shalt.err (0)
      %s62 = sshll.u32 [#allocation2], 4
      %s63 = int_to_ptr.vmem [resolvable:$true] %s62
      %65 = dma.hbm_to_vmem [thread:$0]  %s54, 16, %s63, [#allocation4]
      %s66 = smul.addr %s38, 16
      %s67 = scalar_lea.hbm %s1, %s66
      %s68 = scalar_lea.vmem [#allocation2], 1
      %s69 = scalar_lea.sflag [#allocation4], 1
      // Predicated region
      $region22: #{tpu_custom_call.1} parent=16 // pred_check
        _
      $region23: #{tpu_custom_call.1} parent=16 // pred_check_branch
        %71 = sbr.rel target = $region25
      $region24: #{tpu_custom_call.1} parent=16 // pred_region
        %72 = sst [smem:[#allocation13]] [#allocation16]
        %73 = sst [smem:[#allocation14]] [#allocation15]
      $region25: #{tpu_custom_call.1} parent=16 // pred_fallthru
        _
      %75 = shalt.err (0)
      %s77 = sshll.u32 %s68, 4
      %s78 = int_to_ptr.vmem [resolvable:$true] %s77
      %80 = dma.hbm_to_vmem [thread:$0]  %s67, 16, %s78, %s69
      %s81 = smul.addr %s39, 16
      %s82 = scalar_lea.hbm %s1, %s81
      %s83 = scalar_lea.vmem [#allocation2], 2
      %s84 = scalar_lea.sflag [#allocation4], 2
      // Predicated region
      $region26: #{tpu_custom_call.1} parent=16 // pred_check
        _
      $region27: #{tpu_custom_call.1} parent=16 // pred_check_branch
        %86 = sbr.rel target = $region29
      $region28: #{tpu_custom_call.1} parent=16 // pred_region
        %87 = sst [smem:[#allocation13]] [#allocation18]
        %88 = sst [smem:[#allocation14]] [#allocation17]
      $region29: #{tpu_custom_call.1} parent=16 // pred_fallthru
        _
      %90 = shalt.err (0)
      %s92 = sshll.u32 %s83, 4
      %s93 = int_to_ptr.vmem [resolvable:$true] %s92
      %95 = dma.hbm_to_vmem [thread:$0]  %s82, 16, %s93, %s84
      %s96 = smul.addr %s40, 16
      %s97 = scalar_lea.hbm %s1, %s96
      %s98 = scalar_lea.vmem [#allocation2], 3
      %s99 = scalar_lea.sflag [#allocation4], 3
      // Predicated region
      $region30: #{tpu_custom_call.1} parent=16 // pred_check
        _
      $region31: #{tpu_custom_call.1} parent=16 // pred_check_branch
        %101 = sbr.rel target = $region33
      $region32: #{tpu_custom_call.1} parent=16 // pred_region
        %102 = sst [smem:[#allocation13]] [#allocation20]
        %103 = sst [smem:[#allocation14]] [#allocation19]
      $region33: #{tpu_custom_call.1} parent=16 // pred_fallthru
        _
      %105 = shalt.err (0)
      %s107 = sshll.u32 %s98, 4
      %s108 = int_to_ptr.vmem [resolvable:$true] %s107
      %110 = dma.hbm_to_vmem [thread:$0]  %s97, 16, %s108, %s99
      %s111 = smul.addr %s41, 16
      %s112 = scalar_lea.hbm %s1, %s111
      %s113 = scalar_lea.vmem [#allocation2], 4
      %s114 = scalar_lea.sflag [#allocation4], 4
      // Predicated region
      $region34: #{tpu_custom_call.1} parent=16 // pred_check
        _
      $region35: #{tpu_custom_call.1} parent=16 // pred_check_branch
        %116 = sbr.rel target = $region37
      $region36: #{tpu_custom_call.1} parent=16 // pred_region
        %117 = sst [smem:[#allocation13]] [#allocation22]
        %118 = sst [smem:[#allocation14]] [#allocation21]
      $region37: #{tpu_custom_call.1} parent=16 // pred_fallthru
        _
      %120 = shalt.err (0)
      %s122 = sshll.u32 %s113, 4
      %s123 = int_to_ptr.vmem [resolvable:$true] %s122
      %125 = dma.hbm_to_vmem [thread:$0]  %s112, 16, %s123, %s114
      %s126 = smul.addr %s42, 16
      %s127 = scalar_lea.hbm %s1, %s126
      %s128 = scalar_lea.vmem [#allocation2], 5
      %s129 = scalar_lea.sflag [#allocation4], 5
      // Predicated region
      $region38: #{tpu_custom_call.1} parent=16 // pred_check
        _
      $region39: #{tpu_custom_call.1} parent=16 // pred_check_branch
        %131 = sbr.rel target = $region41
      $region40: #{tpu_custom_call.1} parent=16 // pred_region
        %132 = sst [smem:[#allocation13]] [#allocation24]
        %133 = sst [smem:[#allocation14]] [#allocation23]
      $region41: #{tpu_custom_call.1} parent=16 // pred_fallthru
        _
      %135 = shalt.err (0)
      %s137 = sshll.u32 %s128, 4
      %s138 = int_to_ptr.vmem [resolvable:$true] %s137
      %140 = dma.hbm_to_vmem [thread:$0]  %s127, 16, %s138, %s129
      %s141 = smul.addr %s43, 16
      %s142 = scalar_lea.hbm %s1, %s141
      %s143 = scalar_lea.vmem [#allocation2], 6
      %s144 = scalar_lea.sflag [#allocation4], 6
      // Predicated region
      $region42: #{tpu_custom_call.1} parent=16 // pred_check
        _
      $region43: #{tpu_custom_call.1} parent=16 // pred_check_branch
        %146 = sbr.rel target = $region45
      $region44: #{tpu_custom_call.1} parent=16 // pred_region
        %147 = sst [smem:[#allocation13]] [#allocation26]
        %148 = sst [smem:[#allocation14]] [#allocation25]
      $region45: #{tpu_custom_call.1} parent=16 // pred_fallthru
        _
      %150 = shalt.err (0)
      %s152 = sshll.u32 %s143, 4
      %s153 = int_to_ptr.vmem [resolvable:$true] %s152
      %155 = dma.hbm_to_vmem [thread:$0]  %s142, 16, %s153, %s144
      %s156 = smul.addr %s44, 16
      %s157 = scalar_lea.hbm %s1, %s156
      %s158 = scalar_lea.vmem [#allocation2], 7
      %s159 = scalar_lea.sflag [#allocation4], 7
      // Predicated region
      $region46: #{tpu_custom_call.1} parent=16 // pred_check
        _
      $region47: #{tpu_custom_call.1} parent=16 // pred_check_branch
        %161 = sbr.rel target = $region49
      $region48: #{tpu_custom_call.1} parent=16 // pred_region
        %162 = sst [smem:[#allocation13]] [#allocation28]
        %163 = sst [smem:[#allocation14]] [#allocation27]
      $region49: #{tpu_custom_call.1} parent=16 // pred_fallthru
        _
      %165 = shalt.err (0)
      %s167 = sshll.u32 %s158, 4
      %s168 = int_to_ptr.vmem [resolvable:$true] %s167
      %170 = dma.hbm_to_vmem [thread:$0]  %s157, 16, %s168, %s159
      %s171 = smul.addr %s45, 16
      %s172 = scalar_lea.hbm %s1, %s171
      %s173 = scalar_lea.vmem [#allocation2], 8
      %s174 = scalar_lea.sflag [#allocation4], 8
      // Predicated region
      $region50: #{tpu_custom_call.1} parent=16 // pred_check
        _
      $region51: #{tpu_custom_call.1} parent=16 // pred_check_branch
        %176 = sbr.rel target = $region53
      $region52: #{tpu_custom_call.1} parent=16 // pred_region
        %177 = sst [smem:[#allocation13]] [#allocation30]
        %178 = sst [smem:[#allocation14]] [#allocation29]
      $region53: #{tpu_custom_call.1} parent=16 // pred_fallthru
        _
      %180 = shalt.err (0)
      %s182 = sshll.u32 %s173, 4
      %s183 = int_to_ptr.vmem [resolvable:$true] %s182
      %185 = dma.hbm_to_vmem [thread:$0]  %s172, 16, %s183, %s174
      %s186 = smul.addr %s46, 16
      %s187 = scalar_lea.hbm %s1, %s186
      %s188 = scalar_lea.vmem [#allocation2], 9
      %s189 = scalar_lea.sflag [#allocation4], 9
      // Predicated region
      $region54: #{tpu_custom_call.1} parent=16 // pred_check
        _
      $region55: #{tpu_custom_call.1} parent=16 // pred_check_branch
        %191 = sbr.rel target = $region57
      $region56: #{tpu_custom_call.1} parent=16 // pred_region
        %192 = sst [smem:[#allocation13]] [#allocation32]
        %193 = sst [smem:[#allocation14]] [#allocation31]
      $region57: #{tpu_custom_call.1} parent=16 // pred_fallthru
        _
      %195 = shalt.err (0)
      %s197 = sshll.u32 %s188, 4
      %s198 = int_to_ptr.vmem [resolvable:$true] %s197
      %200 = dma.hbm_to_vmem [thread:$0]  %s187, 16, %s198, %s189
      %s201 = smul.addr %s47, 16
      %s202 = scalar_lea.hbm %s1, %s201
      %s203 = scalar_lea.vmem [#allocation2], 10
      %s204 = scalar_lea.sflag [#allocation4], 10
      // Predicated region
      $region58: #{tpu_custom_call.1} parent=16 // pred_check
        _
      $region59: #{tpu_custom_call.1} parent=16 // pred_check_branch
        %206 = sbr.rel target = $region61
      $region60: #{tpu_custom_call.1} parent=16 // pred_region
        %207 = sst [smem:[#allocation13]] [#allocation34]
        %208 = sst [smem:[#allocation14]] [#allocation33]
      $region61: #{tpu_custom_call.1} parent=16 // pred_fallthru
        _
      %210 = shalt.err (0)
      %s212 = sshll.u32 %s203, 4
      %s213 = int_to_ptr.vmem [resolvable:$true] %s212
      %215 = dma.hbm_to_vmem [thread:$0]  %s202, 16, %s213, %s204
      %s216 = smul.addr %s48, 16
      %s217 = scalar_lea.hbm %s1, %s216
      %s218 = scalar_lea.vmem [#allocation2], 11
      %s219 = scalar_lea.sflag [#allocation4], 11
      // Predicated region
      $region62: #{tpu_custom_call.1} parent=16 // pred_check
        _
      $region63: #{tpu_custom_call.1} parent=16 // pred_check_branch
        %221 = sbr.rel target = $region65
      $region64: #{tpu_custom_call.1} parent=16 // pred_region
        %222 = sst [smem:[#allocation13]] [#allocation36]
        %223 = sst [smem:[#allocation14]] [#allocation35]
      $region65: #{tpu_custom_call.1} parent=16 // pred_fallthru
        _
      %225 = shalt.err (0)
      %s227 = sshll.u32 %s218, 4
      %s228 = int_to_ptr.vmem [resolvable:$true] %s227
      %230 = dma.hbm_to_vmem [thread:$0]  %s217, 16, %s228, %s219
      %s231 = smul.addr %s49, 16
      %s232 = scalar_lea.hbm %s1, %s231
      %s233 = scalar_lea.vmem [#allocation2], 12
      %s234 = scalar_lea.sflag [#allocation4], 12
      // Predicated region
      $region66: #{tpu_custom_call.1} parent=16 // pred_check
        _
      $region67: #{tpu_custom_call.1} parent=16 // pred_check_branch
        %236 = sbr.rel target = $region69
      $region68: #{tpu_custom_call.1} parent=16 // pred_region
        %237 = sst [smem:[#allocation13]] [#allocation38]
        %238 = sst [smem:[#allocation14]] [#allocation37]
      $region69: #{tpu_custom_call.1} parent=16 // pred_fallthru
        _
      %240 = shalt.err (0)
      %s242 = sshll.u32 %s233, 4
      %s243 = int_to_ptr.vmem [resolvable:$true] %s242
      %245 = dma.hbm_to_vmem [thread:$0]  %s232, 16, %s243, %s234
      %s246 = smul.addr %s50, 16
      %s247 = scalar_lea.hbm %s1, %s246
      %s248 = scalar_lea.vmem [#allocation2], 13
      %s249 = scalar_lea.sflag [#allocation4], 13
      // Predicated region
      $region70: #{tpu_custom_call.1} parent=16 // pred_check
        _
      $region71: #{tpu_custom_call.1} parent=16 // pred_check_branch
        %251 = sbr.rel target = $region73
      $region72: #{tpu_custom_call.1} parent=16 // pred_region
        %252 = sst [smem:[#allocation13]] [#allocation40]
        %253 = sst [smem:[#allocation14]] [#allocation39]
      $region73: #{tpu_custom_call.1} parent=16 // pred_fallthru
        _
      %255 = shalt.err (0)
      %s257 = sshll.u32 %s248, 4
      %s258 = int_to_ptr.vmem [resolvable:$true] %s257
      %260 = dma.hbm_to_vmem [thread:$0]  %s247, 16, %s258, %s249
      %s261 = smul.addr %s51, 16
      %s262 = scalar_lea.hbm %s1, %s261
      %s263 = scalar_lea.vmem [#allocation2], 14
      %s264 = scalar_lea.sflag [#allocation4], 14
      // Predicated region
      $region74: #{tpu_custom_call.1} parent=16 // pred_check
        _
      $region75: #{tpu_custom_call.1} parent=16 // pred_check_branch
        %266 = sbr.rel target = $region77
      $region76: #{tpu_custom_call.1} parent=16 // pred_region
        %267 = sst [smem:[#allocation13]] [#allocation42]
        %268 = sst [smem:[#allocation14]] [#allocation41]
      $region77: #{tpu_custom_call.1} parent=16 // pred_fallthru
        _
      %270 = shalt.err (0)
      %s272 = sshll.u32 %s263, 4
      %s273 = int_to_ptr.vmem [resolvable:$true] %s272
      %275 = dma.hbm_to_vmem [thread:$0]  %s262, 16, %s273, %s264
      %s276 = smul.addr %s52, 16
      %s277 = scalar_lea.hbm %s1, %s276
      %s278 = scalar_lea.vmem [#allocation2], 15
      %s279 = scalar_lea.sflag [#allocation4], 15
      // Predicated region
      $region78: #{tpu_custom_call.1} parent=16 // pred_check
        _
      $region79: #{tpu_custom_call.1} parent=16 // pred_check_branch
        %281 = sbr.rel target = $region81
      $region80: #{tpu_custom_call.1} parent=16 // pred_region
        %282 = sst [smem:[#allocation13]] [#allocation44]
        %283 = sst [smem:[#allocation14]] [#allocation43]
      $region81: #{tpu_custom_call.1} parent=16 // pred_fallthru
        _
      %285 = shalt.err (0)
      %s287 = sshll.u32 %s278, 4
      %s288 = int_to_ptr.vmem [resolvable:$true] %s287
      %290 = dma.hbm_to_vmem [thread:$0]  %s277, 16, %s288, %s279
      %s291 = smul.u32 1, 1
      %s292 = sshll.u32 %s291, 4
      %293 = dma.done [#allocation4], %s292
      %s294 = sshll.u32 %s291, 4
      %295 = dma.done %s69, %s294
      %s296 = sshll.u32 %s291, 4
      %297 = dma.done %s84, %s296
      %s298 = sshll.u32 %s291, 4
      %299 = dma.done %s99, %s298
      %s300 = sshll.u32 %s291, 4
      %301 = dma.done %s114, %s300
      %s302 = sshll.u32 %s291, 4
      %303 = dma.done %s129, %s302
      %s304 = sshll.u32 %s291, 4
      %305 = dma.done %s144, %s304
      %s306 = sshll.u32 %s291, 4
      %307 = dma.done %s159, %s306
      %s308 = sshll.u32 %s291, 4
      %309 = dma.done %s174, %s308
      %s310 = sshll.u32 %s291, 4
      %311 = dma.done %s189, %s310
      %s312 = sshll.u32 %s291, 4
      %313 = dma.done %s204, %s312
      %s314 = sshll.u32 %s291, 4
      %315 = dma.done %s219, %s314
      %s316 = sshll.u32 %s291, 4
      %317 = dma.done %s234, %s316
      %s318 = sshll.u32 %s291, 4
      %319 = dma.done %s249, %s318
      %s320 = sshll.u32 %s291, 4
      %321 = dma.done %s264, %s320
      %s322 = sshll.u32 %s291, 4
      %323 = dma.done %s279, %s322
      %v324 = vld [vmem:[#allocation2] sm:$0xff]
      %v325 = vld [vmem:[#allocation2 + $0x8] sm:$0xff]
      %v326 = vmul.f32 %v324, %v324
      %v327 = vmul.f32 %v325, %v325
      %328 = vadd.xlane.f32.xlu0 %v326
      %v329 = vpop.xlane.xlu0 %328
      %330 = vadd.xlane.f32.xlu0 %v327
      %v331 = vpop.xlane.xlu0 %330
      %v332 = vrsqrt.pop %v329
      %v333 = vmul.f32 %v329, %v332
      %vm334 = vcmp.eq.f32.partialorder %v329, inf
      %v335 = vsel %vm334, %v329, %v333
      %vm336 = vcmp.eq.f32.partialorder %v329, 0.0
      %v337 = vand.u32 %v329, 2147483648
      %v338 = vsel %vm336, %v337, %v335
      %v339 = vrsqrt.pop %v331
      %v340 = vmul.f32 %v331, %v339
      %vm341 = vcmp.eq.f32.partialorder %v331, inf
      %v342 = vsel %vm341, %v331, %v340
      %vm343 = vcmp.eq.f32.partialorder %v331, 0.0
      %v344 = vand.u32 %v331, 2147483648
      %v345 = vsel %vm343, %v344, %v342
      %vm346 = vcmp.gt.f32.partialorder %v338, 1.0
      %vm347 = vcmp.gt.f32.partialorder %v345, 1.0
      %v348 = vadd.f32 %v338, 1e-07
      %v349 = vadd.f32 %v345, 1e-07
      %v350 = vrcp.pop %v348
      %v351 = vrcp.pop %v349
      %v352 = vsel %vm346, %v350, 1.0
      %v353 = vsel %vm347, %v351, 1.0
      %v354 = vmul.f32 %v324, %v352
      %v355 = vmul.f32 %v325, %v353
      %v357 = vrot.slane %v354, 2
      %v359 = vadd.f32 %v354, %v357
      %v360 = vrot.slane %v354, 4
      %v362 = vadd.f32 %v359, %v360
      %v363 = vrot.slane %v354, 6
      %v365 = vadd.f32 %v362, %v363
      %v366 = vadd.f32 %v365, %v355
      %v368 = vrot.slane %v355, 2
      %v370 = vadd.f32 %v366, %v368
      %v371 = vrot.slane %v355, 4
      %v373 = vadd.f32 %v370, %v371
      %v374 = vrot.slane %v355, 6
      %v376 = vadd.f32 %v373, %v374
      %v377 = vmul.f32 %v376, 0.125
      %378 = vst [vmem:[#allocation3] sm:$0xff] 0.0
      %379 = vst [vmem:[#allocation3] sm:$0x3] %v377
    $region17: #{tpu_custom_call.1} parent=1 // pred_fallthru
      _
    %v380 = vld [vmem:[#allocation3] sm:$0xff]
    %v381 = vpack.c.bf16 %v380, %v380
    %v382 = vld [vmem:[#allocation7] sm:$0xf]
    %v383 = vld [vmem:[#allocation7 + $0x4] sm:$0xf]
    %v384 = vld [vmem:[#allocation7 + $0x8] sm:$0xf]
    %v385 = vld [vmem:[#allocation7 + $0xc] sm:$0xf]
    %v386 = vld [vmem:[#allocation7 + $0x10] sm:$0xf]
    %v387 = vld [vmem:[#allocation7 + $0x14] sm:$0xf]
    %v388 = vld [vmem:[#allocation7 + $0x18] sm:$0xf]
    %v389 = vld [vmem:[#allocation7 + $0x1c] sm:$0xf]
    %v390 = vld [vmem:[#allocation7 + $0x20] sm:$0xf]
    %v391 = vld [vmem:[#allocation7 + $0x24] sm:$0xf]
    %v392 = vld [vmem:[#allocation7 + $0x28] sm:$0xf]
    %v393 = vld [vmem:[#allocation7 + $0x2c] sm:$0xf]
    %v394 = vld [vmem:[#allocation7 + $0x30] sm:$0xf]
    %v395 = vld [vmem:[#allocation7 + $0x34] sm:$0xf]
    %v396 = vld [vmem:[#allocation7 + $0x38] sm:$0xf]
    %v397 = vld [vmem:[#allocation7 + $0x3c] sm:$0xf]
    %v398 = vld [vmem:[%s3] sm:$0x1]
    %v400 = vlaneseq
    %v401 = vshrl.u32 %v400, 7
    %v402 = vsub.s32 0, %v401
    %v403 = vrot.slane %v398, %v402
    %v421 = vunpack.c.l.b16 %v382
    %v422 = vunpack.c.l.b16 %v383
    %v423 = vunpack.c.l.b16 %v384
    %v424 = vunpack.c.l.b16 %v385
    %v425 = vunpack.c.l.b16 %v386
    %v426 = vunpack.c.l.b16 %v387
    %v427 = vunpack.c.l.b16 %v388
    %v428 = vunpack.c.l.b16 %v389
    %v429 = vunpack.c.l.b16 %v390
    %v430 = vunpack.c.l.b16 %v391
    %v431 = vunpack.c.l.b16 %v392
    %v432 = vunpack.c.l.b16 %v393
    %v433 = vunpack.c.l.b16 %v394
    %v434 = vunpack.c.l.b16 %v395
    %v435 = vunpack.c.l.b16 %v396
    %v436 = vunpack.c.l.b16 %v397
    %v437 = vpack.c.b16 %v422, %v421
    %v438 = vpack.c.b16 %v424, %v423
    %v439 = vpack.c.b16 %v426, %v425
    %v440 = vpack.c.b16 %v428, %v427
    %v441 = vpack.c.b16 %v430, %v429
    %v442 = vpack.c.b16 %v432, %v431
    %v443 = vpack.c.b16 %v434, %v433
    %v444 = vpack.c.b16 %v436, %v435
    %453 = vmatprep.subr.bf16.mxu0 0
    %454 = vmatpush1.bf16.msra.mxu0 %v444
    %455 = vmatprep.subr.bf16.mxu0 0
    %456 = vmatpush1.bf16.msra.mxu0 %v443
    %457 = vmatprep.subr.bf16.mxu0 0
    %458 = vmatpush1.bf16.msra.mxu0 %v442
    %459 = vmatprep.subr.bf16.mxu0 0
    %460 = vmatpush1.bf16.msra.mxu0 %v441
    %461 = vmatprep.subr.bf16.mxu0 0
    %462 = vmatpush1.bf16.msra.mxu0 %v440
    %463 = vmatprep.subr.bf16.mxu0 0
    %464 = vmatpush1.bf16.msra.mxu0 %v439
    %465 = vmatprep.subr.bf16.mxu0 0
    %466 = vmatpush1.bf16.msra.mxu0 %v438
    %467 = vmatprep.subr.bf16.mxu0 0
    %468 = vmatpush1.bf16.msra.mxu0 %v437
    %469 = vmatprep.subr.bf16.mxu0 0
    %470 = vmatpush2.bf16.msra.mxu0 0
    %471 = vmatprep.subr.bf16.mxu0 0
    %472 = vmatpush2.bf16.msra.mxu0 0
    %473 = vmatprep.subr.bf16.mxu0 0
    %474 = vmatpush2.bf16.msra.mxu0 0
    %475 = vmatprep.subr.bf16.mxu0 0
    %476 = vmatpush2.bf16.msra.mxu0 0
    %477 = vmatprep.subr.bf16.mxu0 0
    %478 = vmatpush2.bf16.msra.mxu0 0
    %479 = vmatprep.subr.bf16.mxu0 0
    %480 = vmatpush2.bf16.msra.mxu0 0
    %481 = vmatprep.subr.bf16.mxu0 0
    %482 = vmatpush2.bf16.msra.mxu0 0
    %483 = vmatprep.subr.bf16.mxu0 0
    %484 = vmatpush2.bf16.msra.mxu0 0
    %485 = vmatprep.mubr.bf16.mxu0 0
    %486 = vmatmul.mubr.bf16.gmra.mxu0 %v381
    %v487 = vpop.f32.mrf.mxu0
    %v488 = vadd.f32 %v403, %v487
    %v489 = vpop.f32.mrf.mxu0
    %v490 = vpop.f32.mrf.mxu0
    %v491 = vpop.f32.mrf.mxu0
    %492 = vdwg.mxu0
    %493 = vst [vmem:[#allocation10] sm:$0xff] %v488
    // Predicated region
    $region82: #{tpu_custom_call.1} parent=1 // pred_check
      _
    $region83: #{tpu_custom_call.1} parent=1 // pred_check_branch
      %495 = sbr.rel (0) target = $region85
    $region84: #{tpu_custom_call.1} parent=1 // pred_region
      %s497 = ssub.s32 128, 128
      %498 = vsyncadd [#allocation9], %s497
      %s500 = sshll.u32 [#allocation10], 4
      %s501 = int_to_ptr.vmem [resolvable:$true] %s500
      %503 = dma.vmem_to_hbm [thread:$0]  %s501, 128, %s4, [#allocation9]
    $region85: #{tpu_custom_call.1} parent=1 // pred_fallthru
      _
    // Predicated region
    $region86: #{tpu_custom_call.1} parent=1 // pred_check
      _
    $region87: #{tpu_custom_call.1} parent=1 // pred_check_branch
      %505 = sbr.rel (0) target = $region89
    $region88: #{tpu_custom_call.1} parent=1 // pred_region
      %506 = dma.done [#allocation9], 128
    $region89: #{tpu_custom_call.1} parent=1 // pred_fallthru
      _
    %507 = vsyncpa [#allocation8], 1
    %508 = vsyncpa [#allocation9], 1
  %509 = vsyncmov [#allocation4]
  %s510 = vpop.sfrf %509
  %p511 = scmp.eq.s32.totalorder %s510, 0
  %p512 = pneg %p511
  %514 = shalt.err (%p512)
  %s515 = scalar_lea.sflag [#allocation4], 1
  %516 = vsyncmov %s515
  %s517 = vpop.sfrf %516
  %p518 = scmp.eq.s32.totalorder %s517, 0
  %p519 = pneg %p518
  %521 = shalt.err (%p519)
  %s522 = scalar_lea.sflag [#allocation4], 2
  %523 = vsyncmov %s522
  %s524 = vpop.sfrf %523
  %p525 = scmp.eq.s32.totalorder %s524, 0
  %p526 = pneg %p525
  %528 = shalt.err (%p526)
  %s529 = scalar_lea.sflag [#allocation4], 3
  %530 = vsyncmov %s529
  %s531 = vpop.sfrf %530
  %p532 = scmp.eq.s32.totalorder %s531, 0
  %p533 = pneg %p532
  %535 = shalt.err (%p533)
  %s536 = scalar_lea.sflag [#allocation4], 4
  %537 = vsyncmov %s536
  %s538 = vpop.sfrf %537
  %p539 = scmp.eq.s32.totalorder %s538, 0
  %p540 = pneg %p539
  %542 = shalt.err (%p540)
  %s543 = scalar_lea.sflag [#allocation4], 5
  %544 = vsyncmov %s543
  %s545 = vpop.sfrf %544
  %p546 = scmp.eq.s32.totalorder %s545, 0
  %p547 = pneg %p546
  %549 = shalt.err (%p547)
  %s550 = scalar_lea.sflag [#allocation4], 6
  %551 = vsyncmov %s550
  %s552 = vpop.sfrf %551
  %p553 = scmp.eq.s32.totalorder %s552, 0
  %p554 = pneg %p553
  %556 = shalt.err (%p554)
  %s557 = scalar_lea.sflag [#allocation4], 7
  %558 = vsyncmov %s557
  %s559 = vpop.sfrf %558
  %p560 = scmp.eq.s32.totalorder %s559, 0
  %p561 = pneg %p560
  %563 = shalt.err (%p561)
  %s564 = scalar_lea.sflag [#allocation4], 8
  %565 = vsyncmov %s564
  %s566 = vpop.sfrf %565
  %p567 = scmp.eq.s32.totalorder %s566, 0
  %p568 = pneg %p567
  %570 = shalt.err (%p568)
  %s571 = scalar_lea.sflag [#allocation4], 9
  %572 = vsyncmov %s571
  %s573 = vpop.sfrf %572
  %p574 = scmp.eq.s32.totalorder %s573, 0
  %p575 = pneg %p574
  %577 = shalt.err (%p575)
  %s578 = scalar_lea.sflag [#allocation4], 10
  %579 = vsyncmov %s578
  %s580 = vpop.sfrf %579
  %p581 = scmp.eq.s32.totalorder %s580, 0
  %p582 = pneg %p581
  %584 = shalt.err (%p582)
  %s585 = scalar_lea.sflag [#allocation4], 11
  %586 = vsyncmov %s585
  %s587 = vpop.sfrf %586
  %p588 = scmp.eq.s32.totalorder %s587, 0
  %p589 = pneg %p588
  %591 = shalt.err (%p589)
  %s592 = scalar_lea.sflag [#allocation4], 12
  %593 = vsyncmov %s592
  %s594 = vpop.sfrf %593
  %p595 = scmp.eq.s32.totalorder %s594, 0
  %p596 = pneg %p595
  %598 = shalt.err (%p596)
  %s599 = scalar_lea.sflag [#allocation4], 13
  %600 = vsyncmov %s599
  %s601 = vpop.sfrf %600
  %p602 = scmp.eq.s32.totalorder %s601, 0
  %p603 = pneg %p602
  %605 = shalt.err (%p603)
  %s606 = scalar_lea.sflag [#allocation4], 14
  %607 = vsyncmov %s606
  %s608 = vpop.sfrf %607
  %p609 = scmp.eq.s32.totalorder %s608, 0
  %p610 = pneg %p609
  %612 = shalt.err (%p610)
  %s613 = scalar_lea.sflag [#allocation4], 15
  %614 = vsyncmov %s613
  %s615 = vpop.sfrf %614
  %p616 = scmp.eq.s32.totalorder %s615, 0
  %p617 = pneg %p616
  %619 = shalt.err (%p617)

</llo_original>
